<compile_context>
chip_gen: v7x
topology: tpu7x:2x2x1
jax: 0.10.0
libtpu: 0.0.40
codegen_flags: <defaults>
</compile_context>

<pallas_src>
import functools

import jax
import jax.numpy as jnp
from jax import lax
from jax.experimental import pallas as pl
from jax.experimental.pallas import tpu as pltpu

# -------- small synthetic PhoBERT-like config --------
VOCAB = 64
MAX_POS = 48
HIDDEN = 32
N_HEADS = 2
HEAD_DIM = HIDDEN // N_HEADS
N_LAYERS = 2
INTERMEDIATE = 64
NUM_CLASSES = 3
PAD_IDX = 1
LN_EPS = 1e-5
HEAD_PAD = 128          # lane-dense padded width for the classifier output


# ---------------- in-kernel helpers ----------------

def _layernorm(x, gamma, beta):
    # f32 statistics (v5e has no bf16 VPU/EUP)
    mu = jnp.mean(x, axis=-1, keepdims=True)
    var = jnp.mean(jnp.square(x - mu), axis=-1, keepdims=True)
    return (x - mu) * lax.rsqrt(var + LN_EPS) * gamma + beta


# ---------------- fully fused forward kernel ----------------

def _fused_forward_kernel(emb_ref, bias_ref,
                          embg_ref, embb_ref,
                          wqkv_ref, bqkv_ref, wo_ref, bo_ref,
                          ln1g_ref, ln1b_ref,
                          w1_ref, b1_ref, w2_ref, b2_ref,
                          ln2g_ref, ln2b_ref,
                          pw_ref, pb_ref, cw_ref, cb_ref,
                          o_ref, *, n_layers, n_heads, head_dim, batch, seq):
    H = n_heads * head_dim
    scale = 1.0 / (head_dim ** 0.5)

    # ---- embedding LayerNorm over the whole (B*S, H) token slab ----
    x = _layernorm(emb_ref[...], embg_ref[...], embb_ref[...])          # (B*S, H) f32

    # ---- encoder layers: static loop over stacked (L, ...) weights ----
    for l in range(n_layers):
        # fused QKV projection, full token slab, one MXU matmul
        qkv = jnp.dot(x.astype(jnp.bfloat16), wqkv_ref[l],
                      preferred_element_type=jnp.float32) + bqkv_ref[l]  # (B*S, 3H)

        # attention: static loops over batch & heads; per-head contexts are
        # lane-concatenated, per-batch rows sublane-concatenated, so the
        # output projection below is a single (B*S, H) @ (H, H) matmul.
        ctx_rows = []
        for b in range(batch):
            r0 = b * seq
            bias_b = bias_ref[b]                                         # (1, S)
            head_ctx = []
            for h in range(n_heads):
                lo = h * head_dim
                qh = qkv[r0:r0 + seq, lo:lo + head_dim].astype(jnp.bfloat16)
                kh = qkv[r0:r0 + seq, H + lo:H + lo + head_dim].astype(jnp.bfloat16)
                vh = qkv[r0:r0 + seq, 2 * H + lo:2 * H + lo + head_dim].astype(jnp.bfloat16)

                # q @ k^T contracting on last axes (no XLU transpose)
                s = lax.dot_general(qh, kh, (((1,), (1,)), ((), ())),
                                    preferred_element_type=jnp.float32)  # (S, S)
                s = s * scale + bias_b
                m = jnp.max(s, axis=-1, keepdims=True)
                p = jnp.exp(s - m)                                       # f32
                denom = jnp.sum(p, axis=-1, keepdims=True)
                pv = jnp.dot(p.astype(jnp.bfloat16), vh,
                             preferred_element_type=jnp.float32)         # (S, Dh)
                head_ctx.append(pv * pl.reciprocal(denom, approx=True))
            ctx_rows.append(jnp.concatenate(head_ctx, axis=-1))          # (S, H)
        ctx = jnp.concatenate(ctx_rows, axis=0)                          # (B*S, H)

        # attention output projection + residual + LayerNorm (all fused)
        attn = jnp.dot(ctx.astype(jnp.bfloat16), wo_ref[l],
                       preferred_element_type=jnp.float32) + bo_ref[l]
        h1 = _layernorm(attn + x, ln1g_ref[l], ln1b_ref[l])

        # FFN (gelu) + residual + LayerNorm
        ff = jnp.dot(h1.astype(jnp.bfloat16), w1_ref[l],
                     preferred_element_type=jnp.float32) + b1_ref[l]
        ff = jax.nn.gelu(ff, approximate=True)
        ff2 = jnp.dot(ff.astype(jnp.bfloat16), w2_ref[l],
                      preferred_element_type=jnp.float32) + b2_ref[l]
        x = _layernorm(ff2 + h1, ln2g_ref[l], ln2b_ref[l])

    # ---- pooler (first token of every sequence) + tanh + classifier ----
    cls = jnp.concatenate([x[b * seq:b * seq + 1, :] for b in range(batch)],
                          axis=0)                                        # (B, H)
    pooled = jnp.tanh(jnp.dot(cls.astype(jnp.bfloat16), pw_ref[...],
                              preferred_element_type=jnp.float32) + pb_ref[...])
    # nn.Dropout(0.3) is identity in eval / deterministic inference.
    # TODO(synk): training-mode dropout would use pltpu.prng_seed + prng_random_bits
    logits = jnp.dot(pooled.astype(jnp.bfloat16), cw_ref[...],
                     preferred_element_type=jnp.float32) + cb_ref[...]
    o_ref[...] = logits                        # lane-dense (B, HEAD_PAD) store


def pallas_phobert_forward(params, emb_flat, attn_bias, batch, seq):
    kernel = functools.partial(_fused_forward_kernel,
                               n_layers=N_LAYERS, n_heads=N_HEADS,
                               head_dim=HEAD_DIM, batch=batch, seq=seq)
    # Single launch, no grid: every operand (< 100 KB total) sits whole in VMEM.
    return pl.pallas_call(
        kernel,
        out_shape=jax.ShapeDtypeStruct((batch, HEAD_PAD), jnp.float32),
        compiler_params=pltpu.CompilerParams(vmem_limit_bytes=32 << 20),
    )(emb_flat, attn_bias,
      params["emb_ln_g"], params["emb_ln_b"],
      params["w_qkv"], params["b_qkv"], params["wo"], params["bo"],
      params["ln1_g"], params["ln1_b"],
      params["w1"], params["b1"], params["w2"], params["b2"],
      params["ln2_g"], params["ln2_b"],
      params["pool_w"], params["pool_b"], params["cls_w_pad"], params["cls_b_pad"])


# ---------------- parameters (pre-cast / pre-stacked / pre-padded) ----------------

def init_params(key):
    def dense(k, fan_in, fan_out):
        k1, k2 = jax.random.split(k)
        w = jax.random.normal(k1, (fan_in, fan_out), jnp.float32) * 0.02
        b = jax.random.normal(k2, (fan_out,), jnp.float32) * 0.02
        return w, b

    bf = jnp.bfloat16
    keys = jax.random.split(key, 8 + N_LAYERS)
    p = {}
    p["word_emb"] = jax.random.normal(keys[0], (VOCAB, HIDDEN), jnp.float32) * 0.02
    p["pos_emb"] = jax.random.normal(keys[1], (MAX_POS, HIDDEN), jnp.float32) * 0.02
    p["type_emb"] = jax.random.normal(keys[2], (1, HIDDEN), jnp.float32) * 0.02
    p["emb_ln_g"] = jnp.ones((1, HIDDEN), jnp.float32)
    p["emb_ln_b"] = jnp.zeros((1, HIDDEN), jnp.float32)

    wqkv, bqkv, wo, bo, w1, b1, w2, b2 = [], [], [], [], [], [], [], []
    for i in range(N_LAYERS):
        lk = jax.random.split(keys[3 + i], 6)
        wq, bq_ = dense(lk[0], HIDDEN, HIDDEN)
        wk, bk_ = dense(lk[1], HIDDEN, HIDDEN)
        wv, bv_ = dense(lk[2], HIDDEN, HIDDEN)
        wo_i, bo_i = dense(lk[3], HIDDEN, HIDDEN)
        w1_i, b1_i = dense(lk[4], HIDDEN, INTERMEDIATE)
        w2_i, b2_i = dense(lk[5], INTERMEDIATE, HIDDEN)
        wqkv.append(jnp.concatenate([wq, wk, wv], axis=1))     # fused QKV weight
        bqkv.append(jnp.concatenate([bq_, bk_, bv_], axis=0))
        wo.append(wo_i); bo.append(bo_i)
        w1.append(w1_i); b1.append(b1_i)
        w2.append(w2_i); b2.append(b2_i)

    # stacked along a leading (N_LAYERS, ...) axis, bf16 weights, (L,1,N) biases
    p["w_qkv"] = jnp.stack(wqkv).astype(bf)                                  # (L, H, 3H)
    p["b_qkv"] = jnp.stack(bqkv).reshape(N_LAYERS, 1, 3 * HIDDEN)
    p["wo"] = jnp.stack(wo).astype(bf)                                       # (L, H, H)
    p["bo"] = jnp.stack(bo).reshape(N_LAYERS, 1, HIDDEN)
    p["w1"] = jnp.stack(w1).astype(bf)                                       # (L, H, I)
    p["b1"] = jnp.stack(b1).reshape(N_LAYERS, 1, INTERMEDIATE)
    p["w2"] = jnp.stack(w2).astype(bf)                                       # (L, I, H)
    p["b2"] = jnp.stack(b2).reshape(N_LAYERS, 1, HIDDEN)
    p["ln1_g"] = jnp.ones((N_LAYERS, 1, HIDDEN), jnp.float32)
    p["ln1_b"] = jnp.zeros((N_LAYERS, 1, HIDDEN), jnp.float32)
    p["ln2_g"] = jnp.ones((N_LAYERS, 1, HIDDEN), jnp.float32)
    p["ln2_b"] = jnp.zeros((N_LAYERS, 1, HIDDEN), jnp.float32)

    pw, pb = dense(keys[3 + N_LAYERS], HIDDEN, HIDDEN)
    cw, cb = dense(keys[4 + N_LAYERS], HIDDEN, NUM_CLASSES)
    p["pool_w"] = pw.astype(bf)
    p["pool_b"] = pb.reshape(1, HIDDEN)
    # classifier weights pre-padded to a 128-wide lane-dense output
    cw_p = jnp.zeros((HIDDEN, HEAD_PAD), jnp.float32).at[:, :NUM_CLASSES].set(cw)
    cb_p = jnp.zeros((HEAD_PAD,), jnp.float32).at[:NUM_CLASSES].set(cb)
    p["cls_w_pad"] = cw_p.astype(bf)
    p["cls_b_pad"] = cb_p.reshape(1, HEAD_PAD)
    return p


# ---------------- forward ----------------

def phobert_classifier_forward(params, input_ids, attention_mask):
    B, S = input_ids.shape

    # RoBERTa-style position ids (offset by padding_idx) — glue, stays in JAX
    not_pad = (input_ids != PAD_IDX).astype(jnp.int32)
    position_ids = jnp.cumsum(not_pad, axis=1) * not_pad + PAD_IDX

    # embedding table gathers stay in plain JAX (no clean Pallas gather needed here)
    emb = (params["word_emb"][input_ids]
           + params["pos_emb"][position_ids]
           + params["type_emb"][0][None, None, :]).astype(jnp.float32)
    emb_flat = emb.reshape(B * S, HIDDEN)

    # additive attention-mask bias, broadcast over query rows
    attn_bias = ((1.0 - attention_mask.astype(jnp.float32)) * -1e9).reshape(B, 1, S)

    # ONE fused pallas_call: emb-LN + all encoder layers + pooler + classifier
    logits_pad = pallas_phobert_forward(params, emb_flat, attn_bias, B, S)
    return logits_pad[:, :NUM_CLASSES]


if __name__ == "__main__":
    key = jax.random.PRNGKey(0)
    k_ids, k_par = jax.random.split(key)

    B, S = 2, 8
    input_ids = jax.random.randint(k_ids, (B, S), 2, VOCAB).astype(jnp.int32)
    input_ids = input_ids.at[1, 6:].set(PAD_IDX)           # pad tail of seq 1
    attention_mask = (input_ids != PAD_IDX).astype(jnp.int32)

    params = init_params(k_par)

    logits = jax.jit(phobert_classifier_forward)(params, input_ids, attention_mask)
    jax.block_until_ready(logits)
    assert logits.shape == (B, NUM_CLASSES)
    print("KERNEL_OK")
</pallas_src>

<mosaic_0001>
module attributes {stable_mosaic.version = 11 : i64} {
  func.func @_fused_forward_kernel(%arg0: memref<16x32xf32, #tpu.memory_space<vmem>>, %arg1: memref<2x1x8xf32, #tpu.memory_space<vmem>>, %arg2: memref<1x32xf32, #tpu.memory_space<vmem>>, %arg3: memref<1x32xf32, #tpu.memory_space<vmem>>, %arg4: memref<2x32x96xbf16, #tpu.memory_space<vmem>>, %arg5: memref<2x1x96xf32, #tpu.memory_space<vmem>>, %arg6: memref<2x32x32xbf16, #tpu.memory_space<vmem>>, %arg7: memref<2x1x32xf32, #tpu.memory_space<vmem>>, %arg8: memref<2x1x32xf32, #tpu.memory_space<vmem>>, %arg9: memref<2x1x32xf32, #tpu.memory_space<vmem>>, %arg10: memref<2x32x64xbf16, #tpu.memory_space<vmem>>, %arg11: memref<2x1x64xf32, #tpu.memory_space<vmem>>, %arg12: memref<2x64x32xbf16, #tpu.memory_space<vmem>>, %arg13: memref<2x1x32xf32, #tpu.memory_space<vmem>>, %arg14: memref<2x1x32xf32, #tpu.memory_space<vmem>>, %arg15: memref<2x1x32xf32, #tpu.memory_space<vmem>>, %arg16: memref<32x32xbf16, #tpu.memory_space<vmem>>, %arg17: memref<1x32xf32, #tpu.memory_space<vmem>>, %arg18: memref<32x128xbf16, #tpu.memory_space<vmem>>, %arg19: memref<1x128xf32, #tpu.memory_space<vmem>>, %arg20: memref<2x128xf32, #tpu.memory_space<vmem>>) attributes {dimension_semantics = [], scalar_prefetch = 0 : i64, scratch_operands = 0 : i64, tpu.core_type = #tpu.core_type<tc>} {
    %c0 = arith.constant 0 : index
    %c0_0 = arith.constant 0 : index
    %0 = vector.load %arg0[%c0, %c0_0] : memref<16x32xf32, #tpu.memory_space<vmem>>, vector<16x32xf32>
    %c0_1 = arith.constant 0 : index
    %c0_2 = arith.constant 0 : index
    %1 = vector.load %arg2[%c0_1, %c0_2] : memref<1x32xf32, #tpu.memory_space<vmem>>, vector<1x32xf32>
    %c0_3 = arith.constant 0 : index
    %c0_4 = arith.constant 0 : index
    %2 = vector.load %arg3[%c0_3, %c0_4] : memref<1x32xf32, #tpu.memory_space<vmem>>, vector<1x32xf32>
    %cst = arith.constant dense<0.000000e+00> : vector<16xf32>
    %3 = vector.multi_reduction <add>, %0, %cst [1] : vector<16x32xf32> to vector<16xf32>
    %4 = vector.shape_cast %3 : vector<16xf32> to vector<16x1xf32>
    %cst_5 = arith.constant 3.200000e+01 : f32
    %5 = vector.broadcast %cst_5 : f32 to vector<16x1xf32>
    %6 = arith.divf %4, %5 : vector<16x1xf32>
    %7 = vector.broadcast %6 : vector<16x1xf32> to vector<16x32xf32>
    %8 = arith.subf %0, %7 : vector<16x32xf32>
    %9 = arith.mulf %8, %8 : vector<16x32xf32>
    %cst_6 = arith.constant dense<0.000000e+00> : vector<16xf32>
    %10 = vector.multi_reduction <add>, %9, %cst_6 [1] : vector<16x32xf32> to vector<16xf32>
    %11 = vector.shape_cast %10 : vector<16xf32> to vector<16x1xf32>
    %cst_7 = arith.constant 3.200000e+01 : f32
    %12 = vector.broadcast %cst_7 : f32 to vector<16x1xf32>
    %13 = arith.divf %11, %12 : vector<16x1xf32>
    %14 = vector.broadcast %6 : vector<16x1xf32> to vector<16x32xf32>
    %15 = arith.subf %0, %14 : vector<16x32xf32>
    %cst_8 = arith.constant 9.99999974E-6 : f32
    %16 = vector.broadcast %cst_8 : f32 to vector<16x1xf32>
    %17 = arith.addf %13, %16 : vector<16x1xf32>
    %18 = math.rsqrt %17 : vector<16x1xf32>
    %19 = vector.broadcast %18 : vector<16x1xf32> to vector<16x32xf32>
    %20 = arith.mulf %15, %19 : vector<16x32xf32>
    %21 = vector.broadcast %1 : vector<1x32xf32> to vector<16x32xf32>
    %22 = arith.mulf %20, %21 : vector<16x32xf32>
    %23 = vector.broadcast %2 : vector<1x32xf32> to vector<16x32xf32>
    %24 = arith.addf %22, %23 : vector<16x32xf32>
    %25 = arith.truncf %24 : vector<16x32xf32> to vector<16x32xbf16>
    %c0_9 = arith.constant 0 : index
    %c0_10 = arith.constant 0 : index
    %c0_11 = arith.constant 0 : index
    %26 = vector.load %arg4[%c0_9, %c0_10, %c0_11] : memref<2x32x96xbf16, #tpu.memory_space<vmem>>, vector<1x32x96xbf16>
    %27 = vector.shape_cast %26 : vector<1x32x96xbf16> to vector<32x96xbf16>
    %cst_12 = arith.constant dense<0.000000e+00> : vector<16x96xf32>
    %28 = tpu.matmul %25, %27, %cst_12 {dimension_numbers = #tpu.dot_dimension_numbers<[1], [0], [0], [1], [0, 0, 1, 1], [], []>} : vector<16x32xbf16>, vector<32x96xbf16>, vector<16x96xf32> -> vector<16x96xf32>
    %c0_13 = arith.constant 0 : index
    %c0_14 = arith.constant 0 : index
    %c0_15 = arith.constant 0 : index
    %29 = vector.load %arg5[%c0_13, %c0_14, %c0_15] : memref<2x1x96xf32, #tpu.memory_space<vmem>>, vector<1x1x96xf32>
    %30 = vector.shape_cast %29 : vector<1x1x96xf32> to vector<1x96xf32>
    %31 = vector.broadcast %30 : vector<1x96xf32> to vector<16x96xf32>
    %32 = arith.addf %28, %31 : vector<16x96xf32>
    %c0_16 = arith.constant 0 : index
    %c0_17 = arith.constant 0 : index
    %c0_18 = arith.constant 0 : index
    %33 = vector.load %arg1[%c0_16, %c0_17, %c0_18] : memref<2x1x8xf32, #tpu.memory_space<vmem>>, vector<1x1x8xf32>
    %34 = vector.shape_cast %33 : vector<1x1x8xf32> to vector<1x8xf32>
    %35 = vector.extract_strided_slice %32 {offsets = [0, 0], sizes = [8, 16], strides = [1, 1]} : vector<16x96xf32> to vector<8x16xf32>
    %36 = arith.truncf %35 : vector<8x16xf32> to vector<8x16xbf16>
    %37 = vector.extract_strided_slice %32 {offsets = [0, 32], sizes = [8, 16], strides = [1, 1]} : vector<16x96xf32> to vector<8x16xf32>
    %38 = arith.truncf %37 : vector<8x16xf32> to vector<8x16xbf16>
    %39 = vector.extract_strided_slice %32 {offsets = [0, 64], sizes = [8, 16], strides = [1, 1]} : vector<16x96xf32> to vector<8x16xf32>
    %40 = arith.truncf %39 : vector<8x16xf32> to vector<8x16xbf16>
    %cst_19 = arith.constant dense<0.000000e+00> : vector<8x8xf32>
    %41 = tpu.matmul %36, %38, %cst_19 {dimension_numbers = #tpu.dot_dimension_numbers<[1], [1], [0], [0], [0, 0, 1, 0], [], []>} : vector<8x16xbf16>, vector<8x16xbf16>, vector<8x8xf32> -> vector<8x8xf32>
    %cst_20 = arith.constant 2.500000e-01 : f32
    %42 = vector.broadcast %cst_20 : f32 to vector<8x8xf32>
    %43 = arith.mulf %41, %42 : vector<8x8xf32>
    %44 = vector.broadcast %34 : vector<1x8xf32> to vector<8x8xf32>
    %45 = arith.addf %43, %44 : vector<8x8xf32>
    %cst_21 = arith.constant dense<0xFF800000> : vector<8xf32>
    %46 = vector.multi_reduction <maximumf>, %45, %cst_21 [1] : vector<8x8xf32> to vector<8xf32>
    %47 = vector.shape_cast %46 : vector<8xf32> to vector<8x1xf32>
    %48 = vector.broadcast %47 : vector<8x1xf32> to vector<8x8xf32>
    %49 = arith.subf %45, %48 : vector<8x8xf32>
    %50 = math.exp %49 : vector<8x8xf32>
    %cst_22 = arith.constant dense<0.000000e+00> : vector<8xf32>
    %51 = vector.multi_reduction <add>, %50, %cst_22 [1] : vector<8x8xf32> to vector<8xf32>
    %52 = vector.shape_cast %51 : vector<8xf32> to vector<8x1xf32>
    %53 = arith.truncf %50 : vector<8x8xf32> to vector<8x8xbf16>
    %cst_23 = arith.constant dense<0.000000e+00> : vector<8x16xf32>
    %54 = tpu.matmul %53, %40, %cst_23 {dimension_numbers = #tpu.dot_dimension_numbers<[1], [0], [0], [1], [0, 0, 1, 1], [], []>} : vector<8x8xbf16>, vector<8x16xbf16>, vector<8x16xf32> -> vector<8x16xf32>
    %55 = tpu.reciprocal %52 {approx = true} : vector<8x1xf32> -> vector<8x1xf32>
    %56 = vector.broadcast %55 : vector<8x1xf32> to vector<8x16xf32>
    %57 = arith.mulf %54, %56 : vector<8x16xf32>
    %58 = vector.extract_strided_slice %32 {offsets = [0, 16], sizes = [8, 16], strides = [1, 1]} : vector<16x96xf32> to vector<8x16xf32>
    %59 = arith.truncf %58 : vector<8x16xf32> to vector<8x16xbf16>
    %60 = vector.extract_strided_slice %32 {offsets = [0, 48], sizes = [8, 16], strides = [1, 1]} : vector<16x96xf32> to vector<8x16xf32>
    %61 = arith.truncf %60 : vector<8x16xf32> to vector<8x16xbf16>
    %62 = vector.extract_strided_slice %32 {offsets = [0, 80], sizes = [8, 16], strides = [1, 1]} : vector<16x96xf32> to vector<8x16xf32>
    %63 = arith.truncf %62 : vector<8x16xf32> to vector<8x16xbf16>
    %cst_24 = arith.constant dense<0.000000e+00> : vector<8x8xf32>
    %64 = tpu.matmul %59, %61, %cst_24 {dimension_numbers = #tpu.dot_dimension_numbers<[1], [1], [0], [0], [0, 0, 1, 0], [], []>} : vector<8x16xbf16>, vector<8x16xbf16>, vector<8x8xf32> -> vector<8x8xf32>
    %cst_25 = arith.constant 2.500000e-01 : f32
    %65 = vector.broadcast %cst_25 : f32 to vector<8x8xf32>
    %66 = arith.mulf %64, %65 : vector<8x8xf32>
    %67 = vector.broadcast %34 : vector<1x8xf32> to vector<8x8xf32>
    %68 = arith.addf %66, %67 : vector<8x8xf32>
    %cst_26 = arith.constant dense<0xFF800000> : vector<8xf32>
    %69 = vector.multi_reduction <maximumf>, %68, %cst_26 [1] : vector<8x8xf32> to vector<8xf32>
    %70 = vector.shape_cast %69 : vector<8xf32> to vector<8x1xf32>
    %71 = vector.broadcast %70 : vector<8x1xf32> to vector<8x8xf32>
    %72 = arith.subf %68, %71 : vector<8x8xf32>
    %73 = math.exp %72 : vector<8x8xf32>
    %cst_27 = arith.constant dense<0.000000e+00> : vector<8xf32>
    %74 = vector.multi_reduction <add>, %73, %cst_27 [1] : vector<8x8xf32> to vector<8xf32>
    %75 = vector.shape_cast %74 : vector<8xf32> to vector<8x1xf32>
    %76 = arith.truncf %73 : vector<8x8xf32> to vector<8x8xbf16>
    %cst_28 = arith.constant dense<0.000000e+00> : vector<8x16xf32>
    %77 = tpu.matmul %76, %63, %cst_28 {dimension_numbers = #tpu.dot_dimension_numbers<[1], [0], [0], [1], [0, 0, 1, 1], [], []>} : vector<8x8xbf16>, vector<8x16xbf16>, vector<8x16xf32> -> vector<8x16xf32>
    %78 = tpu.reciprocal %75 {approx = true} : vector<8x1xf32> -> vector<8x1xf32>
    %79 = vector.broadcast %78 : vector<8x1xf32> to vector<8x16xf32>
    %80 = arith.mulf %77, %79 : vector<8x16xf32>
    %81 = tpu.concatenate %57, %80 in 1 : vector<8x16xf32>, vector<8x16xf32> -> vector<8x32xf32>
    %c1 = arith.constant 1 : index
    %c0_29 = arith.constant 0 : index
    %c0_30 = arith.constant 0 : index
    %82 = vector.load %arg1[%c1, %c0_29, %c0_30] : memref<2x1x8xf32, #tpu.memory_space<vmem>>, vector<1x1x8xf32>
    %83 = vector.shape_cast %82 : vector<1x1x8xf32> to vector<1x8xf32>
    %84 = vector.extract_strided_slice %32 {offsets = [8, 0], sizes = [8, 16], strides = [1, 1]} : vector<16x96xf32> to vector<8x16xf32>
    %85 = arith.truncf %84 : vector<8x16xf32> to vector<8x16xbf16>
    %86 = vector.extract_strided_slice %32 {offsets = [8, 32], sizes = [8, 16], strides = [1, 1]} : vector<16x96xf32> to vector<8x16xf32>
    %87 = arith.truncf %86 : vector<8x16xf32> to vector<8x16xbf16>
    %88 = vector.extract_strided_slice %32 {offsets = [8, 64], sizes = [8, 16], strides = [1, 1]} : vector<16x96xf32> to vector<8x16xf32>
    %89 = arith.truncf %88 : vector<8x16xf32> to vector<8x16xbf16>
    %cst_31 = arith.constant dense<0.000000e+00> : vector<8x8xf32>
    %90 = tpu.matmul %85, %87, %cst_31 {dimension_numbers = #tpu.dot_dimension_numbers<[1], [1], [0], [0], [0, 0, 1, 0], [], []>} : vector<8x16xbf16>, vector<8x16xbf16>, vector<8x8xf32> -> vector<8x8xf32>
    %cst_32 = arith.constant 2.500000e-01 : f32
    %91 = vector.broadcast %cst_32 : f32 to vector<8x8xf32>
    %92 = arith.mulf %90, %91 : vector<8x8xf32>
    %93 = vector.broadcast %83 : vector<1x8xf32> to vector<8x8xf32>
    %94 = arith.addf %92, %93 : vector<8x8xf32>
    %cst_33 = arith.constant dense<0xFF800000> : vector<8xf32>
    %95 = vector.multi_reduction <maximumf>, %94, %cst_33 [1] : vector<8x8xf32> to vector<8xf32>
    %96 = vector.shape_cast %95 : vector<8xf32> to vector<8x1xf32>
    %97 = vector.broadcast %96 : vector<8x1xf32> to vector<8x8xf32>
    %98 = arith.subf %94, %97 : vector<8x8xf32>
    %99 = math.exp %98 : vector<8x8xf32>
    %cst_34 = arith.constant dense<0.000000e+00> : vector<8xf32>
    %100 = vector.multi_reduction <add>, %99, %cst_34 [1] : vector<8x8xf32> to vector<8xf32>
    %101 = vector.shape_cast %100 : vector<8xf32> to vector<8x1xf32>
    %102 = arith.truncf %99 : vector<8x8xf32> to vector<8x8xbf16>
    %cst_35 = arith.constant dense<0.000000e+00> : vector<8x16xf32>
    %103 = tpu.matmul %102, %89, %cst_35 {dimension_numbers = #tpu.dot_dimension_numbers<[1], [0], [0], [1], [0, 0, 1, 1], [], []>} : vector<8x8xbf16>, vector<8x16xbf16>, vector<8x16xf32> -> vector<8x16xf32>
    %104 = tpu.reciprocal %101 {approx = true} : vector<8x1xf32> -> vector<8x1xf32>
    %105 = vector.broadcast %104 : vector<8x1xf32> to vector<8x16xf32>
    %106 = arith.mulf %103, %105 : vector<8x16xf32>
    %107 = vector.extract_strided_slice %32 {offsets = [8, 16], sizes = [8, 16], strides = [1, 1]} : vector<16x96xf32> to vector<8x16xf32>
    %108 = arith.truncf %107 : vector<8x16xf32> to vector<8x16xbf16>
    %109 = vector.extract_strided_slice %32 {offsets = [8, 48], sizes = [8, 16], strides = [1, 1]} : vector<16x96xf32> to vector<8x16xf32>
    %110 = arith.truncf %109 : vector<8x16xf32> to vector<8x16xbf16>
    %111 = vector.extract_strided_slice %32 {offsets = [8, 80], sizes = [8, 16], strides = [1, 1]} : vector<16x96xf32> to vector<8x16xf32>
    %112 = arith.truncf %111 : vector<8x16xf32> to vector<8x16xbf16>
    %cst_36 = arith.constant dense<0.000000e+00> : vector<8x8xf32>
    %113 = tpu.matmul %108, %110, %cst_36 {dimension_numbers = #tpu.dot_dimension_numbers<[1], [1], [0], [0], [0, 0, 1, 0], [], []>} : vector<8x16xbf16>, vector<8x16xbf16>, vector<8x8xf32> -> vector<8x8xf32>
    %cst_37 = arith.constant 2.500000e-01 : f32
    %114 = vector.broadcast %cst_37 : f32 to vector<8x8xf32>
    %115 = arith.mulf %113, %114 : vector<8x8xf32>
    %116 = vector.broadcast %83 : vector<1x8xf32> to vector<8x8xf32>
    %117 = arith.addf %115, %116 : vector<8x8xf32>
    %cst_38 = arith.constant dense<0xFF800000> : vector<8xf32>
    %118 = vector.multi_reduction <maximumf>, %117, %cst_38 [1] : vector<8x8xf32> to vector<8xf32>
    %119 = vector.shape_cast %118 : vector<8xf32> to vector<8x1xf32>
    %120 = vector.broadcast %119 : vector<8x1xf32> to vector<8x8xf32>
    %121 = arith.subf %117, %120 : vector<8x8xf32>
    %122 = math.exp %121 : vector<8x8xf32>
    %cst_39 = arith.constant dense<0.000000e+00> : vector<8xf32>
    %123 = vector.multi_reduction <add>, %122, %cst_39 [1] : vector<8x8xf32> to vector<8xf32>
    %124 = vector.shape_cast %123 : vector<8xf32> to vector<8x1xf32>
    %125 = arith.truncf %122 : vector<8x8xf32> to vector<8x8xbf16>
    %cst_40 = arith.constant dense<0.000000e+00> : vector<8x16xf32>
    %126 = tpu.matmul %125, %112, %cst_40 {dimension_numbers = #tpu.dot_dimension_numbers<[1], [0], [0], [1], [0, 0, 1, 1], [], []>} : vector<8x8xbf16>, vector<8x16xbf16>, vector<8x16xf32> -> vector<8x16xf32>
    %127 = tpu.reciprocal %124 {approx = true} : vector<8x1xf32> -> vector<8x1xf32>
    %128 = vector.broadcast %127 : vector<8x1xf32> to vector<8x16xf32>
    %129 = arith.mulf %126, %128 : vector<8x16xf32>
    %130 = tpu.concatenate %106, %129 in 1 : vector<8x16xf32>, vector<8x16xf32> -> vector<8x32xf32>
    %131 = tpu.concatenate %81, %130 in 0 : vector<8x32xf32>, vector<8x32xf32> -> vector<16x32xf32>
    %132 = arith.truncf %131 : vector<16x32xf32> to vector<16x32xbf16>
    %c0_41 = arith.constant 0 : index
    %c0_42 = arith.constant 0 : index
    %c0_43 = arith.constant 0 : index
    %133 = vector.load %arg6[%c0_41, %c0_42, %c0_43] : memref<2x32x32xbf16, #tpu.memory_space<vmem>>, vector<1x32x32xbf16>
    %134 = vector.shape_cast %133 : vector<1x32x32xbf16> to vector<32x32xbf16>
    %cst_44 = arith.constant dense<0.000000e+00> : vector<16x32xf32>
    %135 = tpu.matmul %132, %134, %cst_44 {dimension_numbers = #tpu.dot_dimension_numbers<[1], [0], [0], [1], [0, 0, 1, 1], [], []>} : vector<16x32xbf16>, vector<32x32xbf16>, vector<16x32xf32> -> vector<16x32xf32>
    %c0_45 = arith.constant 0 : index
    %c0_46 = arith.constant 0 : index
    %c0_47 = arith.constant 0 : index
    %136 = vector.load %arg7[%c0_45, %c0_46, %c0_47] : memref<2x1x32xf32, #tpu.memory_space<vmem>>, vector<1x1x32xf32>
    %137 = vector.shape_cast %136 : vector<1x1x32xf32> to vector<1x32xf32>
    %138 = vector.broadcast %137 : vector<1x32xf32> to vector<16x32xf32>
    %139 = arith.addf %135, %138 : vector<16x32xf32>
    %140 = arith.addf %139, %24 : vector<16x32xf32>
    %c0_48 = arith.constant 0 : index
    %c0_49 = arith.constant 0 : index
    %c0_50 = arith.constant 0 : index
    %141 = vector.load %arg8[%c0_48, %c0_49, %c0_50] : memref<2x1x32xf32, #tpu.memory_space<vmem>>, vector<1x1x32xf32>
    %142 = vector.shape_cast %141 : vector<1x1x32xf32> to vector<1x32xf32>
    %c0_51 = arith.constant 0 : index
    %c0_52 = arith.constant 0 : index
    %c0_53 = arith.constant 0 : index
    %143 = vector.load %arg9[%c0_51, %c0_52, %c0_53] : memref<2x1x32xf32, #tpu.memory_space<vmem>>, vector<1x1x32xf32>
    %144 = vector.shape_cast %143 : vector<1x1x32xf32> to vector<1x32xf32>
    %cst_54 = arith.constant dense<0.000000e+00> : vector<16xf32>
    %145 = vector.multi_reduction <add>, %140, %cst_54 [1] : vector<16x32xf32> to vector<16xf32>
    %146 = vector.shape_cast %145 : vector<16xf32> to vector<16x1xf32>
    %cst_55 = arith.constant 3.200000e+01 : f32
    %147 = vector.broadcast %cst_55 : f32 to vector<16x1xf32>
    %148 = arith.divf %146, %147 : vector<16x1xf32>
    %149 = vector.broadcast %148 : vector<16x1xf32> to vector<16x32xf32>
    %150 = arith.subf %140, %149 : vector<16x32xf32>
    %151 = arith.mulf %150, %150 : vector<16x32xf32>
    %cst_56 = arith.constant dense<0.000000e+00> : vector<16xf32>
    %152 = vector.multi_reduction <add>, %151, %cst_56 [1] : vector<16x32xf32> to vector<16xf32>
    %153 = vector.shape_cast %152 : vector<16xf32> to vector<16x1xf32>
    %cst_57 = arith.constant 3.200000e+01 : f32
    %154 = vector.broadcast %cst_57 : f32 to vector<16x1xf32>
    %155 = arith.divf %153, %154 : vector<16x1xf32>
    %156 = vector.broadcast %148 : vector<16x1xf32> to vector<16x32xf32>
    %157 = arith.subf %140, %156 : vector<16x32xf32>
    %cst_58 = arith.constant 9.99999974E-6 : f32
    %158 = vector.broadcast %cst_58 : f32 to vector<16x1xf32>
    %159 = arith.addf %155, %158 : vector<16x1xf32>
    %160 = math.rsqrt %159 : vector<16x1xf32>
    %161 = vector.broadcast %160 : vector<16x1xf32> to vector<16x32xf32>
    %162 = arith.mulf %157, %161 : vector<16x32xf32>
    %163 = vector.broadcast %142 : vector<1x32xf32> to vector<16x32xf32>
    %164 = arith.mulf %162, %163 : vector<16x32xf32>
    %165 = vector.broadcast %144 : vector<1x32xf32> to vector<16x32xf32>
    %166 = arith.addf %164, %165 : vector<16x32xf32>
    %167 = arith.truncf %166 : vector<16x32xf32> to vector<16x32xbf16>
    %c0_59 = arith.constant 0 : index
    %c0_60 = arith.constant 0 : index
    %c0_61 = arith.constant 0 : index
    %168 = vector.load %arg10[%c0_59, %c0_60, %c0_61] : memref<2x32x64xbf16, #tpu.memory_space<vmem>>, vector<1x32x64xbf16>
    %169 = vector.shape_cast %168 : vector<1x32x64xbf16> to vector<32x64xbf16>
    %cst_62 = arith.constant dense<0.000000e+00> : vector<16x64xf32>
    %170 = tpu.matmul %167, %169, %cst_62 {dimension_numbers = #tpu.dot_dimension_numbers<[1], [0], [0], [1], [0, 0, 1, 1], [], []>} : vector<16x32xbf16>, vector<32x64xbf16>, vector<16x64xf32> -> vector<16x64xf32>
    %c0_63 = arith.constant 0 : index
    %c0_64 = arith.constant 0 : index
    %c0_65 = arith.constant 0 : index
    %171 = vector.load %arg11[%c0_63, %c0_64, %c0_65] : memref<2x1x64xf32, #tpu.memory_space<vmem>>, vector<1x1x64xf32>
    %172 = vector.shape_cast %171 : vector<1x1x64xf32> to vector<1x64xf32>
    %173 = vector.broadcast %172 : vector<1x64xf32> to vector<16x64xf32>
    %174 = arith.addf %170, %173 : vector<16x64xf32>
    %175 = arith.mulf %174, %174 : vector<16x64xf32>
    %176 = arith.mulf %174, %175 : vector<16x64xf32>
    %cst_66 = arith.constant 4.471500e-02 : f32
    %177 = vector.broadcast %cst_66 : f32 to vector<16x64xf32>
    %178 = arith.mulf %177, %176 : vector<16x64xf32>
    %179 = arith.addf %174, %178 : vector<16x64xf32>
    %cst_67 = arith.constant 0.797884583 : f32
    %180 = vector.broadcast %cst_67 : f32 to vector<16x64xf32>
    %181 = arith.mulf %180, %179 : vector<16x64xf32>
    %182 = math.tanh %181 : vector<16x64xf32>
    %cst_68 = arith.constant 1.000000e+00 : f32
    %183 = vector.broadcast %cst_68 : f32 to vector<16x64xf32>
    %184 = arith.addf %183, %182 : vector<16x64xf32>
    %cst_69 = arith.constant 5.000000e-01 : f32
    %185 = vector.broadcast %cst_69 : f32 to vector<16x64xf32>
    %186 = arith.mulf %185, %184 : vector<16x64xf32>
    %187 = arith.mulf %174, %186 : vector<16x64xf32>
    %188 = arith.truncf %187 : vector<16x64xf32> to vector<16x64xbf16>
    %c0_70 = arith.constant 0 : index
    %c0_71 = arith.constant 0 : index
    %c0_72 = arith.constant 0 : index
    %189 = vector.load %arg12[%c0_70, %c0_71, %c0_72] : memref<2x64x32xbf16, #tpu.memory_space<vmem>>, vector<1x64x32xbf16>
    %190 = vector.shape_cast %189 : vector<1x64x32xbf16> to vector<64x32xbf16>
    %cst_73 = arith.constant dense<0.000000e+00> : vector<16x32xf32>
    %191 = tpu.matmul %188, %190, %cst_73 {dimension_numbers = #tpu.dot_dimension_numbers<[1], [0], [0], [1], [0, 0, 1, 1], [], []>} : vector<16x64xbf16>, vector<64x32xbf16>, vector<16x32xf32> -> vector<16x32xf32>
    %c0_74 = arith.constant 0 : index
    %c0_75 = arith.constant 0 : index
    %c0_76 = arith.constant 0 : index
    %192 = vector.load %arg13[%c0_74, %c0_75, %c0_76] : memref<2x1x32xf32, #tpu.memory_space<vmem>>, vector<1x1x32xf32>
    %193 = vector.shape_cast %192 : vector<1x1x32xf32> to vector<1x32xf32>
    %194 = vector.broadcast %193 : vector<1x32xf32> to vector<16x32xf32>
    %195 = arith.addf %191, %194 : vector<16x32xf32>
    %196 = arith.addf %195, %166 : vector<16x32xf32>
    %c0_77 = arith.constant 0 : index
    %c0_78 = arith.constant 0 : index
    %c0_79 = arith.constant 0 : index
    %197 = vector.load %arg14[%c0_77, %c0_78, %c0_79] : memref<2x1x32xf32, #tpu.memory_space<vmem>>, vector<1x1x32xf32>
    %198 = vector.shape_cast %197 : vector<1x1x32xf32> to vector<1x32xf32>
    %c0_80 = arith.constant 0 : index
    %c0_81 = arith.constant 0 : index
    %c0_82 = arith.constant 0 : index
    %199 = vector.load %arg15[%c0_80, %c0_81, %c0_82] : memref<2x1x32xf32, #tpu.memory_space<vmem>>, vector<1x1x32xf32>
    %200 = vector.shape_cast %199 : vector<1x1x32xf32> to vector<1x32xf32>
    %cst_83 = arith.constant dense<0.000000e+00> : vector<16xf32>
    %201 = vector.multi_reduction <add>, %196, %cst_83 [1] : vector<16x32xf32> to vector<16xf32>
    %202 = vector.shape_cast %201 : vector<16xf32> to vector<16x1xf32>
    %cst_84 = arith.constant 3.200000e+01 : f32
    %203 = vector.broadcast %cst_84 : f32 to vector<16x1xf32>
    %204 = arith.divf %202, %203 : vector<16x1xf32>
    %205 = vector.broadcast %204 : vector<16x1xf32> to vector<16x32xf32>
    %206 = arith.subf %196, %205 : vector<16x32xf32>
    %207 = arith.mulf %206, %206 : vector<16x32xf32>
    %cst_85 = arith.constant dense<0.000000e+00> : vector<16xf32>
    %208 = vector.multi_reduction <add>, %207, %cst_85 [1] : vector<16x32xf32> to vector<16xf32>
    %209 = vector.shape_cast %208 : vector<16xf32> to vector<16x1xf32>
    %cst_86 = arith.constant 3.200000e+01 : f32
    %210 = vector.broadcast %cst_86 : f32 to vector<16x1xf32>
    %211 = arith.divf %209, %210 : vector<16x1xf32>
    %212 = vector.broadcast %204 : vector<16x1xf32> to vector<16x32xf32>
    %213 = arith.subf %196, %212 : vector<16x32xf32>
    %cst_87 = arith.constant 9.99999974E-6 : f32
    %214 = vector.broadcast %cst_87 : f32 to vector<16x1xf32>
    %215 = arith.addf %211, %214 : vector<16x1xf32>
    %216 = math.rsqrt %215 : vector<16x1xf32>
    %217 = vector.broadcast %216 : vector<16x1xf32> to vector<16x32xf32>
    %218 = arith.mulf %213, %217 : vector<16x32xf32>
    %219 = vector.broadcast %198 : vector<1x32xf32> to vector<16x32xf32>
    %220 = arith.mulf %218, %219 : vector<16x32xf32>
    %221 = vector.broadcast %200 : vector<1x32xf32> to vector<16x32xf32>
    %222 = arith.addf %220, %221 : vector<16x32xf32>
    %223 = arith.truncf %222 : vector<16x32xf32> to vector<16x32xbf16>
    %c1_88 = arith.constant 1 : index
    %c0_89 = arith.constant 0 : index
    %c0_90 = arith.constant 0 : index
    %224 = vector.load %arg4[%c1_88, %c0_89, %c0_90] : memref<2x32x96xbf16, #tpu.memory_space<vmem>>, vector<1x32x96xbf16>
    %225 = vector.shape_cast %224 : vector<1x32x96xbf16> to vector<32x96xbf16>
    %cst_91 = arith.constant dense<0.000000e+00> : vector<16x96xf32>
    %226 = tpu.matmul %223, %225, %cst_91 {dimension_numbers = #tpu.dot_dimension_numbers<[1], [0], [0], [1], [0, 0, 1, 1], [], []>} : vector<16x32xbf16>, vector<32x96xbf16>, vector<16x96xf32> -> vector<16x96xf32>
    %c1_92 = arith.constant 1 : index
    %c0_93 = arith.constant 0 : index
    %c0_94 = arith.constant 0 : index
    %227 = vector.load %arg5[%c1_92, %c0_93, %c0_94] : memref<2x1x96xf32, #tpu.memory_space<vmem>>, vector<1x1x96xf32>
    %228 = vector.shape_cast %227 : vector<1x1x96xf32> to vector<1x96xf32>
    %229 = vector.broadcast %228 : vector<1x96xf32> to vector<16x96xf32>
    %230 = arith.addf %226, %229 : vector<16x96xf32>
    %c0_95 = arith.constant 0 : index
    %c0_96 = arith.constant 0 : index
    %c0_97 = arith.constant 0 : index
    %231 = vector.load %arg1[%c0_95, %c0_96, %c0_97] : memref<2x1x8xf32, #tpu.memory_space<vmem>>, vector<1x1x8xf32>
    %232 = vector.shape_cast %231 : vector<1x1x8xf32> to vector<1x8xf32>
    %233 = vector.extract_strided_slice %230 {offsets = [0, 0], sizes = [8, 16], strides = [1, 1]} : vector<16x96xf32> to vector<8x16xf32>
    %234 = arith.truncf %233 : vector<8x16xf32> to vector<8x16xbf16>
    %235 = vector.extract_strided_slice %230 {offsets = [0, 32], sizes = [8, 16], strides = [1, 1]} : vector<16x96xf32> to vector<8x16xf32>
    %236 = arith.truncf %235 : vector<8x16xf32> to vector<8x16xbf16>
    %237 = vector.extract_strided_slice %230 {offsets = [0, 64], sizes = [8, 16], strides = [1, 1]} : vector<16x96xf32> to vector<8x16xf32>
    %238 = arith.truncf %237 : vector<8x16xf32> to vector<8x16xbf16>
    %cst_98 = arith.constant dense<0.000000e+00> : vector<8x8xf32>
    %239 = tpu.matmul %234, %236, %cst_98 {dimension_numbers = #tpu.dot_dimension_numbers<[1], [1], [0], [0], [0, 0, 1, 0], [], []>} : vector<8x16xbf16>, vector<8x16xbf16>, vector<8x8xf32> -> vector<8x8xf32>
    %cst_99 = arith.constant 2.500000e-01 : f32
    %240 = vector.broadcast %cst_99 : f32 to vector<8x8xf32>
    %241 = arith.mulf %239, %240 : vector<8x8xf32>
    %242 = vector.broadcast %232 : vector<1x8xf32> to vector<8x8xf32>
    %243 = arith.addf %241, %242 : vector<8x8xf32>
    %cst_100 = arith.constant dense<0xFF800000> : vector<8xf32>
    %244 = vector.multi_reduction <maximumf>, %243, %cst_100 [1] : vector<8x8xf32> to vector<8xf32>
    %245 = vector.shape_cast %244 : vector<8xf32> to vector<8x1xf32>
    %246 = vector.broadcast %245 : vector<8x1xf32> to vector<8x8xf32>
    %247 = arith.subf %243, %246 : vector<8x8xf32>
    %248 = math.exp %247 : vector<8x8xf32>
    %cst_101 = arith.constant dense<0.000000e+00> : vector<8xf32>
    %249 = vector.multi_reduction <add>, %248, %cst_101 [1] : vector<8x8xf32> to vector<8xf32>
    %250 = vector.shape_cast %249 : vector<8xf32> to vector<8x1xf32>
    %251 = arith.truncf %248 : vector<8x8xf32> to vector<8x8xbf16>
    %cst_102 = arith.constant dense<0.000000e+00> : vector<8x16xf32>
    %252 = tpu.matmul %251, %238, %cst_102 {dimension_numbers = #tpu.dot_dimension_numbers<[1], [0], [0], [1], [0, 0, 1, 1], [], []>} : vector<8x8xbf16>, vector<8x16xbf16>, vector<8x16xf32> -> vector<8x16xf32>
    %253 = tpu.reciprocal %250 {approx = true} : vector<8x1xf32> -> vector<8x1xf32>
    %254 = vector.broadcast %253 : vector<8x1xf32> to vector<8x16xf32>
    %255 = arith.mulf %252, %254 : vector<8x16xf32>
    %256 = vector.extract_strided_slice %230 {offsets = [0, 16], sizes = [8, 16], strides = [1, 1]} : vector<16x96xf32> to vector<8x16xf32>
    %257 = arith.truncf %256 : vector<8x16xf32> to vector<8x16xbf16>
    %258 = vector.extract_strided_slice %230 {offsets = [0, 48], sizes = [8, 16], strides = [1, 1]} : vector<16x96xf32> to vector<8x16xf32>
    %259 = arith.truncf %258 : vector<8x16xf32> to vector<8x16xbf16>
    %260 = vector.extract_strided_slice %230 {offsets = [0, 80], sizes = [8, 16], strides = [1, 1]} : vector<16x96xf32> to vector<8x16xf32>
    %261 = arith.truncf %260 : vector<8x16xf32> to vector<8x16xbf16>
    %cst_103 = arith.constant dense<0.000000e+00> : vector<8x8xf32>
    %262 = tpu.matmul %257, %259, %cst_103 {dimension_numbers = #tpu.dot_dimension_numbers<[1], [1], [0], [0], [0, 0, 1, 0], [], []>} : vector<8x16xbf16>, vector<8x16xbf16>, vector<8x8xf32> -> vector<8x8xf32>
    %cst_104 = arith.constant 2.500000e-01 : f32
    %263 = vector.broadcast %cst_104 : f32 to vector<8x8xf32>
    %264 = arith.mulf %262, %263 : vector<8x8xf32>
    %265 = vector.broadcast %232 : vector<1x8xf32> to vector<8x8xf32>
    %266 = arith.addf %264, %265 : vector<8x8xf32>
    %cst_105 = arith.constant dense<0xFF800000> : vector<8xf32>
    %267 = vector.multi_reduction <maximumf>, %266, %cst_105 [1] : vector<8x8xf32> to vector<8xf32>
    %268 = vector.shape_cast %267 : vector<8xf32> to vector<8x1xf32>
    %269 = vector.broadcast %268 : vector<8x1xf32> to vector<8x8xf32>
    %270 = arith.subf %266, %269 : vector<8x8xf32>
    %271 = math.exp %270 : vector<8x8xf32>
    %cst_106 = arith.constant dense<0.000000e+00> : vector<8xf32>
    %272 = vector.multi_reduction <add>, %271, %cst_106 [1] : vector<8x8xf32> to vector<8xf32>
    %273 = vector.shape_cast %272 : vector<8xf32> to vector<8x1xf32>
    %274 = arith.truncf %271 : vector<8x8xf32> to vector<8x8xbf16>
    %cst_107 = arith.constant dense<0.000000e+00> : vector<8x16xf32>
    %275 = tpu.matmul %274, %261, %cst_107 {dimension_numbers = #tpu.dot_dimension_numbers<[1], [0], [0], [1], [0, 0, 1, 1], [], []>} : vector<8x8xbf16>, vector<8x16xbf16>, vector<8x16xf32> -> vector<8x16xf32>
    %276 = tpu.reciprocal %273 {approx = true} : vector<8x1xf32> -> vector<8x1xf32>
    %277 = vector.broadcast %276 : vector<8x1xf32> to vector<8x16xf32>
    %278 = arith.mulf %275, %277 : vector<8x16xf32>
    %279 = tpu.concatenate %255, %278 in 1 : vector<8x16xf32>, vector<8x16xf32> -> vector<8x32xf32>
    %c1_108 = arith.constant 1 : index
    %c0_109 = arith.constant 0 : index
    %c0_110 = arith.constant 0 : index
    %280 = vector.load %arg1[%c1_108, %c0_109, %c0_110] : memref<2x1x8xf32, #tpu.memory_space<vmem>>, vector<1x1x8xf32>
    %281 = vector.shape_cast %280 : vector<1x1x8xf32> to vector<1x8xf32>
    %282 = vector.extract_strided_slice %230 {offsets = [8, 0], sizes = [8, 16], strides = [1, 1]} : vector<16x96xf32> to vector<8x16xf32>
    %283 = arith.truncf %282 : vector<8x16xf32> to vector<8x16xbf16>
    %284 = vector.extract_strided_slice %230 {offsets = [8, 32], sizes = [8, 16], strides = [1, 1]} : vector<16x96xf32> to vector<8x16xf32>
    %285 = arith.truncf %284 : vector<8x16xf32> to vector<8x16xbf16>
    %286 = vector.extract_strided_slice %230 {offsets = [8, 64], sizes = [8, 16], strides = [1, 1]} : vector<16x96xf32> to vector<8x16xf32>
    %287 = arith.truncf %286 : vector<8x16xf32> to vector<8x16xbf16>
    %cst_111 = arith.constant dense<0.000000e+00> : vector<8x8xf32>
    %288 = tpu.matmul %283, %285, %cst_111 {dimension_numbers = #tpu.dot_dimension_numbers<[1], [1], [0], [0], [0, 0, 1, 0], [], []>} : vector<8x16xbf16>, vector<8x16xbf16>, vector<8x8xf32> -> vector<8x8xf32>
    %cst_112 = arith.constant 2.500000e-01 : f32
    %289 = vector.broadcast %cst_112 : f32 to vector<8x8xf32>
    %290 = arith.mulf %288, %289 : vector<8x8xf32>
    %291 = vector.broadcast %281 : vector<1x8xf32> to vector<8x8xf32>
    %292 = arith.addf %290, %291 : vector<8x8xf32>
    %cst_113 = arith.constant dense<0xFF800000> : vector<8xf32>
    %293 = vector.multi_reduction <maximumf>, %292, %cst_113 [1] : vector<8x8xf32> to vector<8xf32>
    %294 = vector.shape_cast %293 : vector<8xf32> to vector<8x1xf32>
    %295 = vector.broadcast %294 : vector<8x1xf32> to vector<8x8xf32>
    %296 = arith.subf %292, %295 : vector<8x8xf32>
    %297 = math.exp %296 : vector<8x8xf32>
    %cst_114 = arith.constant dense<0.000000e+00> : vector<8xf32>
    %298 = vector.multi_reduction <add>, %297, %cst_114 [1] : vector<8x8xf32> to vector<8xf32>
    %299 = vector.shape_cast %298 : vector<8xf32> to vector<8x1xf32>
    %300 = arith.truncf %297 : vector<8x8xf32> to vector<8x8xbf16>
    %cst_115 = arith.constant dense<0.000000e+00> : vector<8x16xf32>
    %301 = tpu.matmul %300, %287, %cst_115 {dimension_numbers = #tpu.dot_dimension_numbers<[1], [0], [0], [1], [0, 0, 1, 1], [], []>} : vector<8x8xbf16>, vector<8x16xbf16>, vector<8x16xf32> -> vector<8x16xf32>
    %302 = tpu.reciprocal %299 {approx = true} : vector<8x1xf32> -> vector<8x1xf32>
    %303 = vector.broadcast %302 : vector<8x1xf32> to vector<8x16xf32>
    %304 = arith.mulf %301, %303 : vector<8x16xf32>
    %305 = vector.extract_strided_slice %230 {offsets = [8, 16], sizes = [8, 16], strides = [1, 1]} : vector<16x96xf32> to vector<8x16xf32>
    %306 = arith.truncf %305 : vector<8x16xf32> to vector<8x16xbf16>
    %307 = vector.extract_strided_slice %230 {offsets = [8, 48], sizes = [8, 16], strides = [1, 1]} : vector<16x96xf32> to vector<8x16xf32>
    %308 = arith.truncf %307 : vector<8x16xf32> to vector<8x16xbf16>
    %309 = vector.extract_strided_slice %230 {offsets = [8, 80], sizes = [8, 16], strides = [1, 1]} : vector<16x96xf32> to vector<8x16xf32>
    %310 = arith.truncf %309 : vector<8x16xf32> to vector<8x16xbf16>
    %cst_116 = arith.constant dense<0.000000e+00> : vector<8x8xf32>
    %311 = tpu.matmul %306, %308, %cst_116 {dimension_numbers = #tpu.dot_dimension_numbers<[1], [1], [0], [0], [0, 0, 1, 0], [], []>} : vector<8x16xbf16>, vector<8x16xbf16>, vector<8x8xf32> -> vector<8x8xf32>
    %cst_117 = arith.constant 2.500000e-01 : f32
    %312 = vector.broadcast %cst_117 : f32 to vector<8x8xf32>
    %313 = arith.mulf %311, %312 : vector<8x8xf32>
    %314 = vector.broadcast %281 : vector<1x8xf32> to vector<8x8xf32>
    %315 = arith.addf %313, %314 : vector<8x8xf32>
    %cst_118 = arith.constant dense<0xFF800000> : vector<8xf32>
    %316 = vector.multi_reduction <maximumf>, %315, %cst_118 [1] : vector<8x8xf32> to vector<8xf32>
    %317 = vector.shape_cast %316 : vector<8xf32> to vector<8x1xf32>
    %318 = vector.broadcast %317 : vector<8x1xf32> to vector<8x8xf32>
    %319 = arith.subf %315, %318 : vector<8x8xf32>
    %320 = math.exp %319 : vector<8x8xf32>
    %cst_119 = arith.constant dense<0.000000e+00> : vector<8xf32>
    %321 = vector.multi_reduction <add>, %320, %cst_119 [1] : vector<8x8xf32> to vector<8xf32>
    %322 = vector.shape_cast %321 : vector<8xf32> to vector<8x1xf32>
    %323 = arith.truncf %320 : vector<8x8xf32> to vector<8x8xbf16>
    %cst_120 = arith.constant dense<0.000000e+00> : vector<8x16xf32>
    %324 = tpu.matmul %323, %310, %cst_120 {dimension_numbers = #tpu.dot_dimension_numbers<[1], [0], [0], [1], [0, 0, 1, 1], [], []>} : vector<8x8xbf16>, vector<8x16xbf16>, vector<8x16xf32> -> vector<8x16xf32>
    %325 = tpu.reciprocal %322 {approx = true} : vector<8x1xf32> -> vector<8x1xf32>
    %326 = vector.broadcast %325 : vector<8x1xf32> to vector<8x16xf32>
    %327 = arith.mulf %324, %326 : vector<8x16xf32>
    %328 = tpu.concatenate %304, %327 in 1 : vector<8x16xf32>, vector<8x16xf32> -> vector<8x32xf32>
    %329 = tpu.concatenate %279, %328 in 0 : vector<8x32xf32>, vector<8x32xf32> -> vector<16x32xf32>
    %330 = arith.truncf %329 : vector<16x32xf32> to vector<16x32xbf16>
    %c1_121 = arith.constant 1 : index
    %c0_122 = arith.constant 0 : index
    %c0_123 = arith.constant 0 : index
    %331 = vector.load %arg6[%c1_121, %c0_122, %c0_123] : memref<2x32x32xbf16, #tpu.memory_space<vmem>>, vector<1x32x32xbf16>
    %332 = vector.shape_cast %331 : vector<1x32x32xbf16> to vector<32x32xbf16>
    %cst_124 = arith.constant dense<0.000000e+00> : vector<16x32xf32>
    %333 = tpu.matmul %330, %332, %cst_124 {dimension_numbers = #tpu.dot_dimension_numbers<[1], [0], [0], [1], [0, 0, 1, 1], [], []>} : vector<16x32xbf16>, vector<32x32xbf16>, vector<16x32xf32> -> vector<16x32xf32>
    %c1_125 = arith.constant 1 : index
    %c0_126 = arith.constant 0 : index
    %c0_127 = arith.constant 0 : index
    %334 = vector.load %arg7[%c1_125, %c0_126, %c0_127] : memref<2x1x32xf32, #tpu.memory_space<vmem>>, vector<1x1x32xf32>
    %335 = vector.shape_cast %334 : vector<1x1x32xf32> to vector<1x32xf32>
    %336 = vector.broadcast %335 : vector<1x32xf32> to vector<16x32xf32>
    %337 = arith.addf %333, %336 : vector<16x32xf32>
    %338 = arith.addf %337, %222 : vector<16x32xf32>
    %c1_128 = arith.constant 1 : index
    %c0_129 = arith.constant 0 : index
    %c0_130 = arith.constant 0 : index
    %339 = vector.load %arg8[%c1_128, %c0_129, %c0_130] : memref<2x1x32xf32, #tpu.memory_space<vmem>>, vector<1x1x32xf32>
    %340 = vector.shape_cast %339 : vector<1x1x32xf32> to vector<1x32xf32>
    %c1_131 = arith.constant 1 : index
    %c0_132 = arith.constant 0 : index
    %c0_133 = arith.constant 0 : index
    %341 = vector.load %arg9[%c1_131, %c0_132, %c0_133] : memref<2x1x32xf32, #tpu.memory_space<vmem>>, vector<1x1x32xf32>
    %342 = vector.shape_cast %341 : vector<1x1x32xf32> to vector<1x32xf32>
    %cst_134 = arith.constant dense<0.000000e+00> : vector<16xf32>
    %343 = vector.multi_reduction <add>, %338, %cst_134 [1] : vector<16x32xf32> to vector<16xf32>
    %344 = vector.shape_cast %343 : vector<16xf32> to vector<16x1xf32>
    %cst_135 = arith.constant 3.200000e+01 : f32
    %345 = vector.broadcast %cst_135 : f32 to vector<16x1xf32>
    %346 = arith.divf %344, %345 : vector<16x1xf32>
    %347 = vector.broadcast %346 : vector<16x1xf32> to vector<16x32xf32>
    %348 = arith.subf %338, %347 : vector<16x32xf32>
    %349 = arith.mulf %348, %348 : vector<16x32xf32>
    %cst_136 = arith.constant dense<0.000000e+00> : vector<16xf32>
    %350 = vector.multi_reduction <add>, %349, %cst_136 [1] : vector<16x32xf32> to vector<16xf32>
    %351 = vector.shape_cast %350 : vector<16xf32> to vector<16x1xf32>
    %cst_137 = arith.constant 3.200000e+01 : f32
    %352 = vector.broadcast %cst_137 : f32 to vector<16x1xf32>
    %353 = arith.divf %351, %352 : vector<16x1xf32>
    %354 = vector.broadcast %346 : vector<16x1xf32> to vector<16x32xf32>
    %355 = arith.subf %338, %354 : vector<16x32xf32>
    %cst_138 = arith.constant 9.99999974E-6 : f32
    %356 = vector.broadcast %cst_138 : f32 to vector<16x1xf32>
    %357 = arith.addf %353, %356 : vector<16x1xf32>
    %358 = math.rsqrt %357 : vector<16x1xf32>
    %359 = vector.broadcast %358 : vector<16x1xf32> to vector<16x32xf32>
    %360 = arith.mulf %355, %359 : vector<16x32xf32>
    %361 = vector.broadcast %340 : vector<1x32xf32> to vector<16x32xf32>
    %362 = arith.mulf %360, %361 : vector<16x32xf32>
    %363 = vector.broadcast %342 : vector<1x32xf32> to vector<16x32xf32>
    %364 = arith.addf %362, %363 : vector<16x32xf32>
    %365 = arith.truncf %364 : vector<16x32xf32> to vector<16x32xbf16>
    %c1_139 = arith.constant 1 : index
    %c0_140 = arith.constant 0 : index
    %c0_141 = arith.constant 0 : index
    %366 = vector.load %arg10[%c1_139, %c0_140, %c0_141] : memref<2x32x64xbf16, #tpu.memory_space<vmem>>, vector<1x32x64xbf16>
    %367 = vector.shape_cast %366 : vector<1x32x64xbf16> to vector<32x64xbf16>
    %cst_142 = arith.constant dense<0.000000e+00> : vector<16x64xf32>
    %368 = tpu.matmul %365, %367, %cst_142 {dimension_numbers = #tpu.dot_dimension_numbers<[1], [0], [0], [1], [0, 0, 1, 1], [], []>} : vector<16x32xbf16>, vector<32x64xbf16>, vector<16x64xf32> -> vector<16x64xf32>
    %c1_143 = arith.constant 1 : index
    %c0_144 = arith.constant 0 : index
    %c0_145 = arith.constant 0 : index
    %369 = vector.load %arg11[%c1_143, %c0_144, %c0_145] : memref<2x1x64xf32, #tpu.memory_space<vmem>>, vector<1x1x64xf32>
    %370 = vector.shape_cast %369 : vector<1x1x64xf32> to vector<1x64xf32>
    %371 = vector.broadcast %370 : vector<1x64xf32> to vector<16x64xf32>
    %372 = arith.addf %368, %371 : vector<16x64xf32>
    %373 = arith.mulf %372, %372 : vector<16x64xf32>
    %374 = arith.mulf %372, %373 : vector<16x64xf32>
    %cst_146 = arith.constant 4.471500e-02 : f32
    %375 = vector.broadcast %cst_146 : f32 to vector<16x64xf32>
    %376 = arith.mulf %375, %374 : vector<16x64xf32>
    %377 = arith.addf %372, %376 : vector<16x64xf32>
    %cst_147 = arith.constant 0.797884583 : f32
    %378 = vector.broadcast %cst_147 : f32 to vector<16x64xf32>
    %379 = arith.mulf %378, %377 : vector<16x64xf32>
    %380 = math.tanh %379 : vector<16x64xf32>
    %cst_148 = arith.constant 1.000000e+00 : f32
    %381 = vector.broadcast %cst_148 : f32 to vector<16x64xf32>
    %382 = arith.addf %381, %380 : vector<16x64xf32>
    %cst_149 = arith.constant 5.000000e-01 : f32
    %383 = vector.broadcast %cst_149 : f32 to vector<16x64xf32>
    %384 = arith.mulf %383, %382 : vector<16x64xf32>
    %385 = arith.mulf %372, %384 : vector<16x64xf32>
    %386 = arith.truncf %385 : vector<16x64xf32> to vector<16x64xbf16>
    %c1_150 = arith.constant 1 : index
    %c0_151 = arith.constant 0 : index
    %c0_152 = arith.constant 0 : index
    %387 = vector.load %arg12[%c1_150, %c0_151, %c0_152] : memref<2x64x32xbf16, #tpu.memory_space<vmem>>, vector<1x64x32xbf16>
    %388 = vector.shape_cast %387 : vector<1x64x32xbf16> to vector<64x32xbf16>
    %cst_153 = arith.constant dense<0.000000e+00> : vector<16x32xf32>
    %389 = tpu.matmul %386, %388, %cst_153 {dimension_numbers = #tpu.dot_dimension_numbers<[1], [0], [0], [1], [0, 0, 1, 1], [], []>} : vector<16x64xbf16>, vector<64x32xbf16>, vector<16x32xf32> -> vector<16x32xf32>
    %c1_154 = arith.constant 1 : index
    %c0_155 = arith.constant 0 : index
    %c0_156 = arith.constant 0 : index
    %390 = vector.load %arg13[%c1_154, %c0_155, %c0_156] : memref<2x1x32xf32, #tpu.memory_space<vmem>>, vector<1x1x32xf32>
    %391 = vector.shape_cast %390 : vector<1x1x32xf32> to vector<1x32xf32>
    %392 = vector.broadcast %391 : vector<1x32xf32> to vector<16x32xf32>
    %393 = arith.addf %389, %392 : vector<16x32xf32>
    %394 = arith.addf %393, %364 : vector<16x32xf32>
    %c1_157 = arith.constant 1 : index
    %c0_158 = arith.constant 0 : index
    %c0_159 = arith.constant 0 : index
    %395 = vector.load %arg14[%c1_157, %c0_158, %c0_159] : memref<2x1x32xf32, #tpu.memory_space<vmem>>, vector<1x1x32xf32>
    %396 = vector.shape_cast %395 : vector<1x1x32xf32> to vector<1x32xf32>
    %c1_160 = arith.constant 1 : index
    %c0_161 = arith.constant 0 : index
    %c0_162 = arith.constant 0 : index
    %397 = vector.load %arg15[%c1_160, %c0_161, %c0_162] : memref<2x1x32xf32, #tpu.memory_space<vmem>>, vector<1x1x32xf32>
    %398 = vector.shape_cast %397 : vector<1x1x32xf32> to vector<1x32xf32>
    %cst_163 = arith.constant dense<0.000000e+00> : vector<16xf32>
    %399 = vector.multi_reduction <add>, %394, %cst_163 [1] : vector<16x32xf32> to vector<16xf32>
    %400 = vector.shape_cast %399 : vector<16xf32> to vector<16x1xf32>
    %cst_164 = arith.constant 3.200000e+01 : f32
    %401 = vector.broadcast %cst_164 : f32 to vector<16x1xf32>
    %402 = arith.divf %400, %401 : vector<16x1xf32>
    %403 = vector.broadcast %402 : vector<16x1xf32> to vector<16x32xf32>
    %404 = arith.subf %394, %403 : vector<16x32xf32>
    %405 = arith.mulf %404, %404 : vector<16x32xf32>
    %cst_165 = arith.constant dense<0.000000e+00> : vector<16xf32>
    %406 = vector.multi_reduction <add>, %405, %cst_165 [1] : vector<16x32xf32> to vector<16xf32>
    %407 = vector.shape_cast %406 : vector<16xf32> to vector<16x1xf32>
    %cst_166 = arith.constant 3.200000e+01 : f32
    %408 = vector.broadcast %cst_166 : f32 to vector<16x1xf32>
    %409 = arith.divf %407, %408 : vector<16x1xf32>
    %410 = vector.broadcast %402 : vector<16x1xf32> to vector<16x32xf32>
    %411 = arith.subf %394, %410 : vector<16x32xf32>
    %cst_167 = arith.constant 9.99999974E-6 : f32
    %412 = vector.broadcast %cst_167 : f32 to vector<16x1xf32>
    %413 = arith.addf %409, %412 : vector<16x1xf32>
    %414 = math.rsqrt %413 : vector<16x1xf32>
    %415 = vector.broadcast %414 : vector<16x1xf32> to vector<16x32xf32>
    %416 = arith.mulf %411, %415 : vector<16x32xf32>
    %417 = vector.broadcast %396 : vector<1x32xf32> to vector<16x32xf32>
    %418 = arith.mulf %416, %417 : vector<16x32xf32>
    %419 = vector.broadcast %398 : vector<1x32xf32> to vector<16x32xf32>
    %420 = arith.addf %418, %419 : vector<16x32xf32>
    %421 = vector.extract_strided_slice %420 {offsets = [0, 0], sizes = [1, 32], strides = [1, 1]} : vector<16x32xf32> to vector<1x32xf32>
    %422 = vector.extract_strided_slice %420 {offsets = [8, 0], sizes = [1, 32], strides = [1, 1]} : vector<16x32xf32> to vector<1x32xf32>
    %423 = tpu.concatenate %421, %422 in 0 : vector<1x32xf32>, vector<1x32xf32> -> vector<2x32xf32>
    %424 = arith.truncf %423 : vector<2x32xf32> to vector<2x32xbf16>
    %c0_168 = arith.constant 0 : index
    %c0_169 = arith.constant 0 : index
    %425 = vector.load %arg16[%c0_168, %c0_169] : memref<32x32xbf16, #tpu.memory_space<vmem>>, vector<32x32xbf16>
    %cst_170 = arith.constant dense<0.000000e+00> : vector<2x32xf32>
    %426 = tpu.matmul %424, %425, %cst_170 {dimension_numbers = #tpu.dot_dimension_numbers<[1], [0], [0], [1], [0, 0, 1, 1], [], []>} : vector<2x32xbf16>, vector<32x32xbf16>, vector<2x32xf32> -> vector<2x32xf32>
    %c0_171 = arith.constant 0 : index
    %c0_172 = arith.constant 0 : index
    %427 = vector.load %arg17[%c0_171, %c0_172] : memref<1x32xf32, #tpu.memory_space<vmem>>, vector<1x32xf32>
    %428 = vector.broadcast %427 : vector<1x32xf32> to vector<2x32xf32>
    %429 = arith.addf %426, %428 : vector<2x32xf32>
    %430 = math.tanh %429 : vector<2x32xf32>
    %431 = arith.truncf %430 : vector<2x32xf32> to vector<2x32xbf16>
    %c0_173 = arith.constant 0 : index
    %c0_174 = arith.constant 0 : index
    %432 = vector.load %arg18[%c0_173, %c0_174] : memref<32x128xbf16, #tpu.memory_space<vmem>>, vector<32x128xbf16>
    %cst_175 = arith.constant dense<0.000000e+00> : vector<2x128xf32>
    %433 = tpu.matmul %431, %432, %cst_175 {dimension_numbers = #tpu.dot_dimension_numbers<[1], [0], [0], [1], [0, 0, 1, 1], [], []>} : vector<2x32xbf16>, vector<32x128xbf16>, vector<2x128xf32> -> vector<2x128xf32>
    %c0_176 = arith.constant 0 : index
    %c0_177 = arith.constant 0 : index
    %434 = vector.load %arg19[%c0_176, %c0_177] : memref<1x128xf32, #tpu.memory_space<vmem>>, vector<1x128xf32>
    %435 = vector.broadcast %434 : vector<1x128xf32> to vector<2x128xf32>
    %436 = arith.addf %433, %435 : vector<2x128xf32>
    %c0_178 = arith.constant 0 : index
    %c0_179 = arith.constant 0 : index
    %437 = vector.load %arg20[%c0_178, %c0_179] : memref<2x128xf32, #tpu.memory_space<vmem>>, vector<2x128xf32>
    tpu.vector_store %arg20[%c0_178, %c0_179], %436 {strides = array<i32>} : memref<2x128xf32, #tpu.memory_space<vmem>>, vector<2x128xf32>,
    return
  }
}

</mosaic_0001>

<llo_original>
// kernel: phobert_classifier_forward.1
$region0: #{phobert_classifier_forward.1}
  #allocation0 [shape = 'u32[]', space=smem, size = 0x4, offset = 0x4, fixed_abs, tag = 'smem constant byte address 0x4 - core index']
  #allocation1 [shape = 'u32[144,128]{1,0:T(1,128)}', space=vmem, size = 0x12000, scoped, tag = 'internal scratch']
  %s0 = inlined_call_operand.vmem [shape: f32[16,32], index: 0, kind: input, shape index: {}]
  %s1 = inlined_call_operand.vmem [shape: f32[2,1,8], index: 1, kind: input, shape index: {}]
  %s2 = inlined_call_operand.vmem [shape: f32[1,32], index: 2, kind: input, shape index: {}]
  %s3 = inlined_call_operand.vmem [shape: f32[1,32], index: 3, kind: input, shape index: {}]
  %s4 = inlined_call_operand.vmem [shape: bf16[2,32,96], index: 4, kind: input, shape index: {}]
  %s5 = inlined_call_operand.vmem [shape: f32[2,1,96], index: 5, kind: input, shape index: {}]
  %s6 = inlined_call_operand.vmem [shape: bf16[2,32,32], index: 6, kind: input, shape index: {}]
  %s7 = inlined_call_operand.vmem [shape: f32[2,1,32], index: 7, kind: input, shape index: {}]
  %s8 = inlined_call_operand.vmem [shape: f32[2,1,32], index: 8, kind: input, shape index: {}]
  %s9 = inlined_call_operand.vmem [shape: f32[2,1,32], index: 9, kind: input, shape index: {}]
  %s10 = inlined_call_operand.vmem [shape: bf16[2,32,64], index: 10, kind: input, shape index: {}]
  %s11 = inlined_call_operand.vmem [shape: f32[2,1,64], index: 11, kind: input, shape index: {}]
  %s12 = inlined_call_operand.vmem [shape: bf16[2,64,32], index: 12, kind: input, shape index: {}]
  %s13 = inlined_call_operand.vmem [shape: f32[2,1,32], index: 13, kind: input, shape index: {}]
  %s14 = inlined_call_operand.vmem [shape: f32[2,1,32], index: 14, kind: input, shape index: {}]
  %s15 = inlined_call_operand.vmem [shape: f32[2,1,32], index: 15, kind: input, shape index: {}]
  %s16 = inlined_call_operand.vmem [shape: bf16[32,32], index: 16, kind: input, shape index: {}]
  %s17 = inlined_call_operand.vmem [shape: f32[1,32], index: 17, kind: input, shape index: {}]
  %s18 = inlined_call_operand.vmem [shape: bf16[32,128], index: 18, kind: input, shape index: {}]
  %s19 = inlined_call_operand.vmem [shape: f32[1,128], index: 19, kind: input, shape index: {}]
  %s20 = inlined_call_operand.hbm [shape: f32[2,128], index: 20, kind: output, shape index: {}]
  %s21 = sld [smem:[#allocation0]]
  $region90: #{phobert_classifier_forward.1} parent=0
    _
  %s23 = ssub.s32 1, %s21
  %s24 = scalar_select 0, %s23, %s21
  $region1: #{phobert_classifier_forward.1} parent=0
    #allocation2 [shape = 'u8[1024]{0}', space=vmem, size = 0x400, scoped, tag = 'output window, operand 0, single buffered']
    #allocation3 [shape = 's32[1]{0}', space=sflag, size = 0x4, scoped, tag = 'scoped memory for phobert_classifier_forward.1']
    %25 = vsyncpa [#allocation3], 0
    // Predicated region
    $region2: #{phobert_classifier_forward.1} parent=1 // pred_check
      _
    $region3: #{phobert_classifier_forward.1} parent=1 // pred_check_branch
      %27 = sbr.rel (0) target = $region5
    $region4: #{phobert_classifier_forward.1} parent=1 // pred_region
      _
    $region5: #{phobert_classifier_forward.1} parent=1 // pred_fallthru
      _
    // Predicated region
    $region6: #{phobert_classifier_forward.1} parent=1 // pred_check
      _
    $region7: #{phobert_classifier_forward.1} parent=1 // pred_check_branch
      %29 = sbr.rel (0) target = $region9
    $region8: #{phobert_classifier_forward.1} parent=1 // pred_region
      _
    $region9: #{phobert_classifier_forward.1} parent=1 // pred_fallthru
      _
    // Predicated region
    $region10: #{phobert_classifier_forward.1} parent=1 // pred_check
      _
    $region11: #{phobert_classifier_forward.1} parent=1 // pred_check_branch
      %31 = sbr.rel (0) target = $region13
    $region12: #{phobert_classifier_forward.1} parent=1 // pred_region
      _
    $region13: #{phobert_classifier_forward.1} parent=1 // pred_fallthru
      _
    // Predicated region
    $region14: #{phobert_classifier_forward.1} parent=1 // pred_check
      _
    $region15: #{phobert_classifier_forward.1} parent=1 // pred_check_branch
      %33 = sbr.rel (0) target = $region17
    $region16: #{phobert_classifier_forward.1} parent=1 // pred_region
      _
    $region17: #{phobert_classifier_forward.1} parent=1 // pred_fallthru
      _
    // Predicated region
    $region18: #{phobert_classifier_forward.1} parent=1 // pred_check
      _
    $region19: #{phobert_classifier_forward.1} parent=1 // pred_check_branch
      %35 = sbr.rel (0) target = $region21
    $region20: #{phobert_classifier_forward.1} parent=1 // pred_region
      _
    $region21: #{phobert_classifier_forward.1} parent=1 // pred_fallthru
      _
    // Predicated region
    $region22: #{phobert_classifier_forward.1} parent=1 // pred_check
      _
    $region23: #{phobert_classifier_forward.1} parent=1 // pred_check_branch
      %37 = sbr.rel (0) target = $region25
    $region24: #{phobert_classifier_forward.1} parent=1 // pred_region
      _
    $region25: #{phobert_classifier_forward.1} parent=1 // pred_fallthru
      _
    // Predicated region
    $region26: #{phobert_classifier_forward.1} parent=1 // pred_check
      _
    $region27: #{phobert_classifier_forward.1} parent=1 // pred_check_branch
      %39 = sbr.rel (0) target = $region29
    $region28: #{phobert_classifier_forward.1} parent=1 // pred_region
      _
    $region29: #{phobert_classifier_forward.1} parent=1 // pred_fallthru
      _
    // Predicated region
    $region30: #{phobert_classifier_forward.1} parent=1 // pred_check
      _
    $region31: #{phobert_classifier_forward.1} parent=1 // pred_check_branch
      %41 = sbr.rel (0) target = $region33
    $region32: #{phobert_classifier_forward.1} parent=1 // pred_region
      _
    $region33: #{phobert_classifier_forward.1} parent=1 // pred_fallthru
      _
    // Predicated region
    $region34: #{phobert_classifier_forward.1} parent=1 // pred_check
      _
    $region35: #{phobert_classifier_forward.1} parent=1 // pred_check_branch
      %43 = sbr.rel (0) target = $region37
    $region36: #{phobert_classifier_forward.1} parent=1 // pred_region
      _
    $region37: #{phobert_classifier_forward.1} parent=1 // pred_fallthru
      _
    // Predicated region
    $region38: #{phobert_classifier_forward.1} parent=1 // pred_check
      _
    $region39: #{phobert_classifier_forward.1} parent=1 // pred_check_branch
      %45 = sbr.rel (0) target = $region41
    $region40: #{phobert_classifier_forward.1} parent=1 // pred_region
      _
    $region41: #{phobert_classifier_forward.1} parent=1 // pred_fallthru
      _
    // Predicated region
    $region42: #{phobert_classifier_forward.1} parent=1 // pred_check
      _
    $region43: #{phobert_classifier_forward.1} parent=1 // pred_check_branch
      %47 = sbr.rel (0) target = $region45
    $region44: #{phobert_classifier_forward.1} parent=1 // pred_region
      _
    $region45: #{phobert_classifier_forward.1} parent=1 // pred_fallthru
      _
    // Predicated region
    $region46: #{phobert_classifier_forward.1} parent=1 // pred_check
      _
    $region47: #{phobert_classifier_forward.1} parent=1 // pred_check_branch
      %49 = sbr.rel (0) target = $region49
    $region48: #{phobert_classifier_forward.1} parent=1 // pred_region
      _
    $region49: #{phobert_classifier_forward.1} parent=1 // pred_fallthru
      _
    // Predicated region
    $region50: #{phobert_classifier_forward.1} parent=1 // pred_check
      _
    $region51: #{phobert_classifier_forward.1} parent=1 // pred_check_branch
      %51 = sbr.rel (0) target = $region53
    $region52: #{phobert_classifier_forward.1} parent=1 // pred_region
      _
    $region53: #{phobert_classifier_forward.1} parent=1 // pred_fallthru
      _
    // Predicated region
    $region54: #{phobert_classifier_forward.1} parent=1 // pred_check
      _
    $region55: #{phobert_classifier_forward.1} parent=1 // pred_check_branch
      %53 = sbr.rel (0) target = $region57
    $region56: #{phobert_classifier_forward.1} parent=1 // pred_region
      _
    $region57: #{phobert_classifier_forward.1} parent=1 // pred_fallthru
      _
    // Predicated region
    $region58: #{phobert_classifier_forward.1} parent=1 // pred_check
      _
    $region59: #{phobert_classifier_forward.1} parent=1 // pred_check_branch
      %55 = sbr.rel (0) target = $region61
    $region60: #{phobert_classifier_forward.1} parent=1 // pred_region
      _
    $region61: #{phobert_classifier_forward.1} parent=1 // pred_fallthru
      _
    // Predicated region
    $region62: #{phobert_classifier_forward.1} parent=1 // pred_check
      _
    $region63: #{phobert_classifier_forward.1} parent=1 // pred_check_branch
      %57 = sbr.rel (0) target = $region65
    $region64: #{phobert_classifier_forward.1} parent=1 // pred_region
      _
    $region65: #{phobert_classifier_forward.1} parent=1 // pred_fallthru
      _
    // Predicated region
    $region66: #{phobert_classifier_forward.1} parent=1 // pred_check
      _
    $region67: #{phobert_classifier_forward.1} parent=1 // pred_check_branch
      %59 = sbr.rel (0) target = $region69
    $region68: #{phobert_classifier_forward.1} parent=1 // pred_region
      _
    $region69: #{phobert_classifier_forward.1} parent=1 // pred_fallthru
      _
    // Predicated region
    $region70: #{phobert_classifier_forward.1} parent=1 // pred_check
      _
    $region71: #{phobert_classifier_forward.1} parent=1 // pred_check_branch
      %61 = sbr.rel (0) target = $region73
    $region72: #{phobert_classifier_forward.1} parent=1 // pred_region
      _
    $region73: #{phobert_classifier_forward.1} parent=1 // pred_fallthru
      _
    // Predicated region
    $region74: #{phobert_classifier_forward.1} parent=1 // pred_check
      _
    $region75: #{phobert_classifier_forward.1} parent=1 // pred_check_branch
      %63 = sbr.rel (0) target = $region77
    $region76: #{phobert_classifier_forward.1} parent=1 // pred_region
      _
    $region77: #{phobert_classifier_forward.1} parent=1 // pred_fallthru
      _
    // Predicated region
    $region78: #{phobert_classifier_forward.1} parent=1 // pred_check
      _
    $region79: #{phobert_classifier_forward.1} parent=1 // pred_check_branch
      %65 = sbr.rel (0) target = $region81
    $region80: #{phobert_classifier_forward.1} parent=1 // pred_region
      _
    $region81: #{phobert_classifier_forward.1} parent=1 // pred_fallthru
      _
    %v67 = vld [vmem:[%s0] sm:$0xff]
    %v68 = vld [vmem:[%s0 + $0x8] sm:$0xff]
    %v69 = vld [vmem:[%s2] sm:$0x1]
    %v70 = vld [vmem:[%s3] sm:$0x1]
    %vm71 = vcmask 261120
    %v72 = vsel %vm71, %v67, 0.0
    %73 = vadd.xlane.f32.xlu0 %v72
    %v74 = vpop.xlane.xlu0 %73
    %v75 = vsel %vm71, %v68, 0.0
    %76 = vadd.xlane.f32.xlu0 %v75
    %v77 = vpop.xlane.xlu0 %76
    %v78 = vrcp.pop 32.0
    %v79 = vmul.f32 %v74, %v78
    %v80 = vmul.f32 %v77, %v78
    %v81 = vsub.f32 %v67, %v79
    %v82 = vsub.f32 %v68, %v80
    %v83 = vmul.f32 %v81, %v81
    %v84 = vmul.f32 %v82, %v82
    %v85 = vsel %vm71, %v83, 0.0
    %86 = vadd.xlane.f32.xlu0 %v85
    %v87 = vpop.xlane.xlu0 %86
    %v88 = vsel %vm71, %v84, 0.0
    %89 = vadd.xlane.f32.xlu0 %v88
    %v90 = vpop.xlane.xlu0 %89
    %v91 = vmul.f32 %v87, %v78
    %v92 = vmul.f32 %v90, %v78
    %v93 = vadd.f32 %v91, 1e-05
    %v94 = vadd.f32 %v92, 1e-05
    %v95 = vrsqrt.pop %v93
    %v96 = vrsqrt.pop %v94
    %v97 = vmul.f32 %v81, %v95
    %v98 = vmul.f32 %v82, %v96
    %v100 = vlaneseq
    %v101 = vshrl.u32 %v100, 7
    %v102 = vsub.s32 0, %v101
    %v103 = vrot.slane %v69, %v102
    %v105 = vmul.f32 %v97, %v103
    %v106 = vmul.f32 %v98, %v103
    %v108 = vlaneseq
    %v109 = vshrl.u32 %v108, 7
    %v110 = vsub.s32 0, %v109
    %v111 = vrot.slane %v70, %v110
    %v113 = vadd.f32 %v105, %v111
    %v114 = vadd.f32 %v106, %v111
    %v115 = vpack.c.bf16 %v114, %v113
    %v116 = vld [vmem:[%s4] sm:$0xf]
    %v117 = vld [vmem:[%s4 + $0x4] sm:$0xf]
    %v118 = vld [vmem:[%s4 + $0x8] sm:$0xf]
    %v119 = vld [vmem:[%s4 + $0xc] sm:$0xf]
    %v120 = vld [vmem:[%s5] sm:$0x1]
    %v122 = vlaneseq
    %v123 = vshrl.u32 %v122, 7
    %v124 = vsub.s32 0, %v123
    %v125 = vrot.slane %v120, %v124
    %v131 = vunpack.c.l.b16 %v116
    %v132 = vunpack.c.l.b16 %v117
    %v133 = vunpack.c.l.b16 %v118
    %v134 = vunpack.c.l.b16 %v119
    %v135 = vpack.c.b16 %v132, %v131
    %v136 = vpack.c.b16 %v134, %v133
    %v140 = vsel %vm71, %v115, 0
    %142 = vmatprep.subr.bf16.mxu0 0
    %143 = vmatpush1.bf16.msra.mxu0 %v135
    %144 = vmatprep.subr.bf16.mxu0 0
    %145 = vmatpush1.bf16.msra.mxu0 %v136
    %146 = vmatprep.subr.bf16.mxu0 0
    %147 = vmatpush1.bf16.msra.mxu0 0
    %148 = vmatprep.subr.bf16.mxu0 0
    %149 = vmatpush1.bf16.msra.mxu0 0
    %150 = vmatprep.subr.bf16.mxu0 0
    %151 = vmatpush1.bf16.msra.mxu0 0
    %152 = vmatprep.subr.bf16.mxu0 0
    %153 = vmatpush1.bf16.msra.mxu0 0
    %154 = vmatprep.subr.bf16.mxu0 0
    %155 = vmatpush1.bf16.msra.mxu0 0
    %156 = vmatprep.subr.bf16.mxu0 0
    %157 = vmatpush1.bf16.msra.mxu0 0
    %158 = vmatprep.subr.bf16.mxu0 0
    %159 = vmatpush1.bf16.msra.mxu0 0
    %160 = vmatprep.subr.bf16.mxu0 0
    %161 = vmatpush1.bf16.msra.mxu0 0
    %162 = vmatprep.subr.bf16.mxu0 0
    %163 = vmatpush1.bf16.msra.mxu0 0
    %164 = vmatprep.subr.bf16.mxu0 0
    %165 = vmatpush1.bf16.msra.mxu0 0
    %166 = vmatprep.subr.bf16.mxu0 0
    %167 = vmatpush1.bf16.msra.mxu0 0
    %168 = vmatprep.subr.bf16.mxu0 0
    %169 = vmatpush1.bf16.msra.mxu0 0
    %170 = vmatprep.subr.bf16.mxu0 0
    %171 = vmatpush1.bf16.msra.mxu0 0
    %172 = vmatprep.subr.bf16.mxu0 0
    %173 = vmatpush1.bf16.msra.mxu0 0
    %174 = vmatprep.mubr.bf16.mxu0 0
    %175 = vmatmul.mubr.bf16.gmra.mrb[0].mxu0 %v140
    %v176 = vpop.f32.mrb[0].mxu0
    %v177 = vadd.f32 %v125, %v176
    %v178 = vpop.f32.mrb[0].mxu0
    %v179 = vpop.f32.mrb[0].mxu0
    %v180 = vadd.f32 %v125, %v179
    %v181 = vpop.f32.mrb[0].mxu0
    %182 = vdwg.mxu0
    %v183 = vld [vmem:[%s1] sm:$0x1]
    %v184 = vpack.c.bf16 %v177, %v177
    %186 = vrot.lane.b32.xlu0 %v184, 96
    %v187 = vpop.permute.xlu0 %186
    %vm188 = vcmask 130048
    %v190 = vsel %vm188, %v184, 0
    %v193 = vsel %vm188, %v187, 0
    %195 = vmatprep.subr.bf16.mxu0 0
    %196 = vmatpush1.bf16.xpose.msra.mxu0 %v193
    %197 = vmatprep.subr.bf16.mxu0 0
    %198 = vmatpush1.bf16.xpose.msra.mxu0 0
    %199 = vmatprep.subr.bf16.mxu0 0
    %200 = vmatpush1.bf16.xpose.msra.mxu0 0
    %201 = vmatprep.subr.bf16.mxu0 0
    %202 = vmatpush1.bf16.xpose.msra.mxu0 0
    %203 = vmatprep.subr.bf16.mxu0 0
    %204 = vmatpush1.bf16.xpose.msra.mxu0 0
    %205 = vmatprep.subr.bf16.mxu0 0
    %206 = vmatpush1.bf16.xpose.msra.mxu0 0
    %207 = vmatprep.subr.bf16.mxu0 0
    %208 = vmatpush1.bf16.xpose.msra.mxu0 0
    %209 = vmatprep.subr.bf16.mxu0 0
    %210 = vmatpush1.bf16.xpose.msra.mxu0 0
    %211 = vmatprep.subr.bf16.mxu0 0
    %212 = vmatpush1.bf16.xpose.msra.mxu0 0
    %213 = vmatprep.subr.bf16.mxu0 0
    %214 = vmatpush1.bf16.xpose.msra.mxu0 0
    %215 = vmatprep.subr.bf16.mxu0 0
    %216 = vmatpush1.bf16.xpose.msra.mxu0 0
    %217 = vmatprep.subr.bf16.mxu0 0
    %218 = vmatpush1.bf16.xpose.msra.mxu0 0
    %219 = vmatprep.subr.bf16.mxu0 0
    %220 = vmatpush1.bf16.xpose.msra.mxu0 0
    %221 = vmatprep.subr.bf16.mxu0 0
    %222 = vmatpush1.bf16.xpose.msra.mxu0 0
    %223 = vmatprep.subr.bf16.mxu0 0
    %224 = vmatpush1.bf16.xpose.msra.mxu0 0
    %225 = vmatprep.subr.bf16.mxu0 0
    %226 = vmatpush1.bf16.xpose.msra.mxu0 0
    %227 = vmatprep.mubr.bf16.mxu0 0
    %228 = vmatmul.mubr.bf16.gmra.mrb[0].mxu0 %v190
    %v229 = vpop.f32.mrb[0].mxu0
    %v230 = vadd.f32 0.0, %v229
    %v231 = vpop.f32.mrb[0].mxu0
    %v232 = vpop.f32.mrb[0].mxu0
    %v233 = vpop.f32.mrb[0].mxu0
    %234 = vdwg.mxu0
    %v235 = vmul.f32 %v230, 0.25
    %v237 = vlaneseq
    %v238 = vshrl.u32 %v237, 7
    %v239 = vsub.s32 0, %v238
    %v240 = vrot.slane %v183, %v239
    %v242 = vadd.f32 %v235, %v240
    %vm243 = vcmask 64512
    %v244 = vsel %vm243, %v242, -inf
    %245 = vmax.xlane.f32.xlu0 %v244
    %v246 = vpop.xlane.xlu0 %245
    %v247 = vsub.f32 %v242, %v246
    %v248 = vmul.f32 %v247, 1.442695
    %v249 = vpow.pop %v248
    %v250 = vsel %vm243, %v249, 0.0
    %251 = vadd.xlane.f32.xlu0 %v250
    %v252 = vpop.xlane.xlu0 %251
    %v253 = vpack.c.bf16 %v249, %v249
    %254 = vrot.lane.b32.xlu0 %v184, 64
    %v255 = vpop.permute.xlu0 %254
    %v257 = vsel %vm243, %v253, 0
    %vm259 = vcmask 1043456
    %v261 = vsel %vm259, %v255, 0
    %263 = vmatprep.subr.bf16.mxu0 0
    %264 = vmatpush1.bf16.msra.mxu0 %v261
    %265 = vmatprep.subr.bf16.mxu0 0
    %266 = vmatpush1.bf16.msra.mxu0 0
    %267 = vmatprep.subr.bf16.mxu0 0
    %268 = vmatpush1.bf16.msra.mxu0 0
    %269 = vmatprep.subr.bf16.mxu0 0
    %270 = vmatpush1.bf16.msra.mxu0 0
    %271 = vmatprep.subr.bf16.mxu0 0
    %272 = vmatpush1.bf16.msra.mxu0 0
    %273 = vmatprep.subr.bf16.mxu0 0
    %274 = vmatpush1.bf16.msra.mxu0 0
    %275 = vmatprep.subr.bf16.mxu0 0
    %276 = vmatpush1.bf16.msra.mxu0 0
    %277 = vmatprep.subr.bf16.mxu0 0
    %278 = vmatpush1.bf16.msra.mxu0 0
    %279 = vmatprep.subr.bf16.mxu0 0
    %280 = vmatpush1.bf16.msra.mxu0 0
    %281 = vmatprep.subr.bf16.mxu0 0
    %282 = vmatpush1.bf16.msra.mxu0 0
    %283 = vmatprep.subr.bf16.mxu0 0
    %284 = vmatpush1.bf16.msra.mxu0 0
    %285 = vmatprep.subr.bf16.mxu0 0
    %286 = vmatpush1.bf16.msra.mxu0 0
    %287 = vmatprep.subr.bf16.mxu0 0
    %288 = vmatpush1.bf16.msra.mxu0 0
    %289 = vmatprep.subr.bf16.mxu0 0
    %290 = vmatpush1.bf16.msra.mxu0 0
    %291 = vmatprep.subr.bf16.mxu0 0
    %292 = vmatpush1.bf16.msra.mxu0 0
    %293 = vmatprep.subr.bf16.mxu0 0
    %294 = vmatpush1.bf16.msra.mxu0 0
    %295 = vmatprep.mubr.bf16.mxu0 0
    %296 = vmatmul.mubr.bf16.gmra.mrb[0].mxu0 %v257
    %v297 = vpop.f32.mrb[0].mxu0
    %v298 = vadd.f32 0.0, %v297
    %v299 = vpop.f32.mrb[0].mxu0
    %v300 = vpop.f32.mrb[0].mxu0
    %v301 = vpop.f32.mrb[0].mxu0
    %302 = vdwg.mxu0
    %v303 = vrcp.pop %v252
    %v304 = vmul.f32 %v298, %v303
    %305 = vrot.lane.b32.xlu0 %v184, 112
    %v306 = vpop.permute.xlu0 %305
    %307 = vrot.lane.b32.xlu0 %v184, 80
    %v308 = vpop.permute.xlu0 %307
    %v310 = vsel %vm188, %v306, 0
    %v313 = vsel %vm188, %v308, 0
    %315 = vmatprep.subr.bf16.mxu0 0
    %316 = vmatpush1.bf16.xpose.msra.mxu0 %v313
    %317 = vmatprep.subr.bf16.mxu0 0
    %318 = vmatpush1.bf16.xpose.msra.mxu0 0
    %319 = vmatprep.subr.bf16.mxu0 0
    %320 = vmatpush1.bf16.xpose.msra.mxu0 0
    %321 = vmatprep.subr.bf16.mxu0 0
    %322 = vmatpush1.bf16.xpose.msra.mxu0 0
    %323 = vmatprep.subr.bf16.mxu0 0
    %324 = vmatpush1.bf16.xpose.msra.mxu0 0
    %325 = vmatprep.subr.bf16.mxu0 0
    %326 = vmatpush1.bf16.xpose.msra.mxu0 0
    %327 = vmatprep.subr.bf16.mxu0 0
    %328 = vmatpush1.bf16.xpose.msra.mxu0 0
    %329 = vmatprep.subr.bf16.mxu0 0
    %330 = vmatpush1.bf16.xpose.msra.mxu0 0
    %331 = vmatprep.subr.bf16.mxu0 0
    %332 = vmatpush1.bf16.xpose.msra.mxu0 0
    %333 = vmatprep.subr.bf16.mxu0 0
    %334 = vmatpush1.bf16.xpose.msra.mxu0 0
    %335 = vmatprep.subr.bf16.mxu0 0
    %336 = vmatpush1.bf16.xpose.msra.mxu0 0
    %337 = vmatprep.subr.bf16.mxu0 0
    %338 = vmatpush1.bf16.xpose.msra.mxu0 0
    %339 = vmatprep.subr.bf16.mxu0 0
    %340 = vmatpush1.bf16.xpose.msra.mxu0 0
    %341 = vmatprep.subr.bf16.mxu0 0
    %342 = vmatpush1.bf16.xpose.msra.mxu0 0
    %343 = vmatprep.subr.bf16.mxu0 0
    %344 = vmatpush1.bf16.xpose.msra.mxu0 0
    %345 = vmatprep.subr.bf16.mxu0 0
    %346 = vmatpush1.bf16.xpose.msra.mxu0 0
    %347 = vmatprep.mubr.bf16.mxu0 0
    %348 = vmatmul.mubr.bf16.gmra.mrb[0].mxu0 %v310
    %v349 = vpop.f32.mrb[0].mxu0
    %v350 = vadd.f32 0.0, %v349
    %v351 = vpop.f32.mrb[0].mxu0
    %v352 = vpop.f32.mrb[0].mxu0
    %v353 = vpop.f32.mrb[0].mxu0
    %354 = vdwg.mxu0
    %v355 = vmul.f32 %v350, 0.25
    %v356 = vadd.f32 %v355, %v240
    %v357 = vsel %vm243, %v356, -inf
    %358 = vmax.xlane.f32.xlu0 %v357
    %v359 = vpop.xlane.xlu0 %358
    %v360 = vsub.f32 %v356, %v359
    %v361 = vmul.f32 %v360, 1.442695
    %v362 = vpow.pop %v361
    %v363 = vsel %vm243, %v362, 0.0
    %364 = vadd.xlane.f32.xlu0 %v363
    %v365 = vpop.xlane.xlu0 %364
    %v366 = vpack.c.bf16 %v362, %v362
    %367 = vrot.lane.b32.xlu0 %v184, 48
    %v368 = vpop.permute.xlu0 %367
    %v370 = vsel %vm243, %v366, 0
    %v373 = vsel %vm259, %v368, 0
    %375 = vmatprep.subr.bf16.mxu0 0
    %376 = vmatpush1.bf16.msra.mxu0 %v373
    %377 = vmatprep.subr.bf16.mxu0 0
    %378 = vmatpush1.bf16.msra.mxu0 0
    %379 = vmatprep.subr.bf16.mxu0 0
    %380 = vmatpush1.bf16.msra.mxu0 0
    %381 = vmatprep.subr.bf16.mxu0 0
    %382 = vmatpush1.bf16.msra.mxu0 0
    %383 = vmatprep.subr.bf16.mxu0 0
    %384 = vmatpush1.bf16.msra.mxu0 0
    %385 = vmatprep.subr.bf16.mxu0 0
    %386 = vmatpush1.bf16.msra.mxu0 0
    %387 = vmatprep.subr.bf16.mxu0 0
    %388 = vmatpush1.bf16.msra.mxu0 0
    %389 = vmatprep.subr.bf16.mxu0 0
    %390 = vmatpush1.bf16.msra.mxu0 0
    %391 = vmatprep.subr.bf16.mxu0 0
    %392 = vmatpush1.bf16.msra.mxu0 0
    %393 = vmatprep.subr.bf16.mxu0 0
    %394 = vmatpush1.bf16.msra.mxu0 0
    %395 = vmatprep.subr.bf16.mxu0 0
    %396 = vmatpush1.bf16.msra.mxu0 0
    %397 = vmatprep.subr.bf16.mxu0 0
    %398 = vmatpush1.bf16.msra.mxu0 0
    %399 = vmatprep.subr.bf16.mxu0 0
    %400 = vmatpush1.bf16.msra.mxu0 0
    %401 = vmatprep.subr.bf16.mxu0 0
    %402 = vmatpush1.bf16.msra.mxu0 0
    %403 = vmatprep.subr.bf16.mxu0 0
    %404 = vmatpush1.bf16.msra.mxu0 0
    %405 = vmatprep.subr.bf16.mxu0 0
    %406 = vmatpush1.bf16.msra.mxu0 0
    %407 = vmatprep.mubr.bf16.mxu0 0
    %408 = vmatmul.mubr.bf16.gmra.mrb[0].mxu0 %v370
    %v409 = vpop.f32.mrb[0].mxu0
    %v410 = vadd.f32 0.0, %v409
    %v411 = vpop.f32.mrb[0].mxu0
    %v412 = vpop.f32.mrb[0].mxu0
    %v413 = vpop.f32.mrb[0].mxu0
    %414 = vdwg.mxu0
    %v415 = vrcp.pop %v365
    %v416 = vmul.f32 %v410, %v415
    %418 = vrot.lane.b32.xlu0 %v416, 16
    %v419 = vpop.permute.xlu0 %418
    %v421 = vsel %vm188, %v304, %v419
    %s422 = scalar_lea.vmem %s1, 1
    %v423 = vld [vmem:[%s422] sm:$0x1]
    %v424 = vpack.c.bf16 %v180, %v180
    %426 = vrot.lane.b32.xlu0 %v424, 96
    %v427 = vpop.permute.xlu0 %426
    %v429 = vsel %vm188, %v424, 0
    %v432 = vsel %vm188, %v427, 0
    %434 = vmatprep.subr.bf16.mxu0 0
    %435 = vmatpush1.bf16.xpose.msra.mxu0 %v432
    %436 = vmatprep.subr.bf16.mxu0 0
    %437 = vmatpush1.bf16.xpose.msra.mxu0 0
    %438 = vmatprep.subr.bf16.mxu0 0
    %439 = vmatpush1.bf16.xpose.msra.mxu0 0
    %440 = vmatprep.subr.bf16.mxu0 0
    %441 = vmatpush1.bf16.xpose.msra.mxu0 0
    %442 = vmatprep.subr.bf16.mxu0 0
    %443 = vmatpush1.bf16.xpose.msra.mxu0 0
    %444 = vmatprep.subr.bf16.mxu0 0
    %445 = vmatpush1.bf16.xpose.msra.mxu0 0
    %446 = vmatprep.subr.bf16.mxu0 0
    %447 = vmatpush1.bf16.xpose.msra.mxu0 0
    %448 = vmatprep.subr.bf16.mxu0 0
    %449 = vmatpush1.bf16.xpose.msra.mxu0 0
    %450 = vmatprep.subr.bf16.mxu0 0
    %451 = vmatpush1.bf16.xpose.msra.mxu0 0
    %452 = vmatprep.subr.bf16.mxu0 0
    %453 = vmatpush1.bf16.xpose.msra.mxu0 0
    %454 = vmatprep.subr.bf16.mxu0 0
    %455 = vmatpush1.bf16.xpose.msra.mxu0 0
    %456 = vmatprep.subr.bf16.mxu0 0
    %457 = vmatpush1.bf16.xpose.msra.mxu0 0
    %458 = vmatprep.subr.bf16.mxu0 0
    %459 = vmatpush1.bf16.xpose.msra.mxu0 0
    %460 = vmatprep.subr.bf16.mxu0 0
    %461 = vmatpush1.bf16.xpose.msra.mxu0 0
    %462 = vmatprep.subr.bf16.mxu0 0
    %463 = vmatpush1.bf16.xpose.msra.mxu0 0
    %464 = vmatprep.subr.bf16.mxu0 0
    %465 = vmatpush1.bf16.xpose.msra.mxu0 0
    %466 = vmatprep.mubr.bf16.mxu0 0
    %467 = vmatmul.mubr.bf16.gmra.mrb[0].mxu0 %v429
    %v468 = vpop.f32.mrb[0].mxu0
    %v469 = vadd.f32 0.0, %v468
    %v470 = vpop.f32.mrb[0].mxu0
    %v471 = vpop.f32.mrb[0].mxu0
    %v472 = vpop.f32.mrb[0].mxu0
    %473 = vdwg.mxu0
    %v474 = vmul.f32 %v469, 0.25
    %v476 = vlaneseq
    %v477 = vshrl.u32 %v476, 7
    %v478 = vsub.s32 0, %v477
    %v479 = vrot.slane %v423, %v478
    %v481 = vadd.f32 %v474, %v479
    %v482 = vsel %vm243, %v481, -inf
    %483 = vmax.xlane.f32.xlu0 %v482
    %v484 = vpop.xlane.xlu0 %483
    %v485 = vsub.f32 %v481, %v484
    %v486 = vmul.f32 %v485, 1.442695
    %v487 = vpow.pop %v486
    %v488 = vsel %vm243, %v487, 0.0
    %489 = vadd.xlane.f32.xlu0 %v488
    %v490 = vpop.xlane.xlu0 %489
    %v491 = vpack.c.bf16 %v487, %v487
    %492 = vrot.lane.b32.xlu0 %v424, 64
    %v493 = vpop.permute.xlu0 %492
    %v495 = vsel %vm243, %v491, 0
    %v498 = vsel %vm259, %v493, 0
    %500 = vmatprep.subr.bf16.mxu0 0
    %501 = vmatpush1.bf16.msra.mxu0 %v498
    %502 = vmatprep.subr.bf16.mxu0 0
    %503 = vmatpush1.bf16.msra.mxu0 0
    %504 = vmatprep.subr.bf16.mxu0 0
    %505 = vmatpush1.bf16.msra.mxu0 0
    %506 = vmatprep.subr.bf16.mxu0 0
    %507 = vmatpush1.bf16.msra.mxu0 0
    %508 = vmatprep.subr.bf16.mxu0 0
    %509 = vmatpush1.bf16.msra.mxu0 0
    %510 = vmatprep.subr.bf16.mxu0 0
    %511 = vmatpush1.bf16.msra.mxu0 0
    %512 = vmatprep.subr.bf16.mxu0 0
    %513 = vmatpush1.bf16.msra.mxu0 0
    %514 = vmatprep.subr.bf16.mxu0 0
    %515 = vmatpush1.bf16.msra.mxu0 0
    %516 = vmatprep.subr.bf16.mxu0 0
    %517 = vmatpush1.bf16.msra.mxu0 0
    %518 = vmatprep.subr.bf16.mxu0 0
    %519 = vmatpush1.bf16.msra.mxu0 0
    %520 = vmatprep.subr.bf16.mxu0 0
    %521 = vmatpush1.bf16.msra.mxu0 0
    %522 = vmatprep.subr.bf16.mxu0 0
    %523 = vmatpush1.bf16.msra.mxu0 0
    %524 = vmatprep.subr.bf16.mxu0 0
    %525 = vmatpush1.bf16.msra.mxu0 0
    %526 = vmatprep.subr.bf16.mxu0 0
    %527 = vmatpush1.bf16.msra.mxu0 0
    %528 = vmatprep.subr.bf16.mxu0 0
    %529 = vmatpush1.bf16.msra.mxu0 0
    %530 = vmatprep.subr.bf16.mxu0 0
    %531 = vmatpush1.bf16.msra.mxu0 0
    %532 = vmatprep.mubr.bf16.mxu0 0
    %533 = vmatmul.mubr.bf16.gmra.mrb[0].mxu0 %v495
    %v534 = vpop.f32.mrb[0].mxu0
    %v535 = vadd.f32 0.0, %v534
    %v536 = vpop.f32.mrb[0].mxu0
    %v537 = vpop.f32.mrb[0].mxu0
    %v538 = vpop.f32.mrb[0].mxu0
    %539 = vdwg.mxu0
    %v540 = vrcp.pop %v490
    %v541 = vmul.f32 %v535, %v540
    %542 = vrot.lane.b32.xlu0 %v424, 112
    %v543 = vpop.permute.xlu0 %542
    %544 = vrot.lane.b32.xlu0 %v424, 80
    %v545 = vpop.permute.xlu0 %544
    %v547 = vsel %vm188, %v543, 0
    %v550 = vsel %vm188, %v545, 0
    %552 = vmatprep.subr.bf16.mxu0 0
    %553 = vmatpush1.bf16.xpose.msra.mxu0 %v550
    %554 = vmatprep.subr.bf16.mxu0 0
    %555 = vmatpush1.bf16.xpose.msra.mxu0 0
    %556 = vmatprep.subr.bf16.mxu0 0
    %557 = vmatpush1.bf16.xpose.msra.mxu0 0
    %558 = vmatprep.subr.bf16.mxu0 0
    %559 = vmatpush1.bf16.xpose.msra.mxu0 0
    %560 = vmatprep.subr.bf16.mxu0 0
    %561 = vmatpush1.bf16.xpose.msra.mxu0 0
    %562 = vmatprep.subr.bf16.mxu0 0
    %563 = vmatpush1.bf16.xpose.msra.mxu0 0
    %564 = vmatprep.subr.bf16.mxu0 0
    %565 = vmatpush1.bf16.xpose.msra.mxu0 0
    %566 = vmatprep.subr.bf16.mxu0 0
    %567 = vmatpush1.bf16.xpose.msra.mxu0 0
    %568 = vmatprep.subr.bf16.mxu0 0
    %569 = vmatpush1.bf16.xpose.msra.mxu0 0
    %570 = vmatprep.subr.bf16.mxu0 0
    %571 = vmatpush1.bf16.xpose.msra.mxu0 0
    %572 = vmatprep.subr.bf16.mxu0 0
    %573 = vmatpush1.bf16.xpose.msra.mxu0 0
    %574 = vmatprep.subr.bf16.mxu0 0
    %575 = vmatpush1.bf16.xpose.msra.mxu0 0
    %576 = vmatprep.subr.bf16.mxu0 0
    %577 = vmatpush1.bf16.xpose.msra.mxu0 0
    %578 = vmatprep.subr.bf16.mxu0 0
    %579 = vmatpush1.bf16.xpose.msra.mxu0 0
    %580 = vmatprep.subr.bf16.mxu0 0
    %581 = vmatpush1.bf16.xpose.msra.mxu0 0
    %582 = vmatprep.subr.bf16.mxu0 0
    %583 = vmatpush1.bf16.xpose.msra.mxu0 0
    %584 = vmatprep.mubr.bf16.mxu0 0
    %585 = vmatmul.mubr.bf16.gmra.mrb[0].mxu0 %v547
    %v586 = vpop.f32.mrb[0].mxu0
    %v587 = vadd.f32 0.0, %v586
    %v588 = vpop.f32.mrb[0].mxu0
    %v589 = vpop.f32.mrb[0].mxu0
    %v590 = vpop.f32.mrb[0].mxu0
    %591 = vdwg.mxu0
    %v592 = vmul.f32 %v587, 0.25
    %v593 = vadd.f32 %v592, %v479
    %v594 = vsel %vm243, %v593, -inf
    %595 = vmax.xlane.f32.xlu0 %v594
    %v596 = vpop.xlane.xlu0 %595
    %v597 = vsub.f32 %v593, %v596
    %v598 = vmul.f32 %v597, 1.442695
    %v599 = vpow.pop %v598
    %v600 = vsel %vm243, %v599, 0.0
    %601 = vadd.xlane.f32.xlu0 %v600
    %v602 = vpop.xlane.xlu0 %601
    %v603 = vpack.c.bf16 %v599, %v599
    %604 = vrot.lane.b32.xlu0 %v424, 48
    %v605 = vpop.permute.xlu0 %604
    %v607 = vsel %vm243, %v603, 0
    %v610 = vsel %vm259, %v605, 0
    %612 = vmatprep.subr.bf16.mxu0 0
    %613 = vmatpush1.bf16.msra.mxu0 %v610
    %614 = vmatprep.subr.bf16.mxu0 0
    %615 = vmatpush1.bf16.msra.mxu0 0
    %616 = vmatprep.subr.bf16.mxu0 0
    %617 = vmatpush1.bf16.msra.mxu0 0
    %618 = vmatprep.subr.bf16.mxu0 0
    %619 = vmatpush1.bf16.msra.mxu0 0
    %620 = vmatprep.subr.bf16.mxu0 0
    %621 = vmatpush1.bf16.msra.mxu0 0
    %622 = vmatprep.subr.bf16.mxu0 0
    %623 = vmatpush1.bf16.msra.mxu0 0
    %624 = vmatprep.subr.bf16.mxu0 0
    %625 = vmatpush1.bf16.msra.mxu0 0
    %626 = vmatprep.subr.bf16.mxu0 0
    %627 = vmatpush1.bf16.msra.mxu0 0
    %628 = vmatprep.subr.bf16.mxu0 0
    %629 = vmatpush1.bf16.msra.mxu0 0
    %630 = vmatprep.subr.bf16.mxu0 0
    %631 = vmatpush1.bf16.msra.mxu0 0
    %632 = vmatprep.subr.bf16.mxu0 0
    %633 = vmatpush1.bf16.msra.mxu0 0
    %634 = vmatprep.subr.bf16.mxu0 0
    %635 = vmatpush1.bf16.msra.mxu0 0
    %636 = vmatprep.subr.bf16.mxu0 0
    %637 = vmatpush1.bf16.msra.mxu0 0
    %638 = vmatprep.subr.bf16.mxu0 0
    %639 = vmatpush1.bf16.msra.mxu0 0
    %640 = vmatprep.subr.bf16.mxu0 0
    %641 = vmatpush1.bf16.msra.mxu0 0
    %642 = vmatprep.subr.bf16.mxu0 0
    %643 = vmatpush1.bf16.msra.mxu0 0
    %644 = vmatprep.mubr.bf16.mxu0 0
    %645 = vmatmul.mubr.bf16.gmra.mrb[0].mxu0 %v607
    %v646 = vpop.f32.mrb[0].mxu0
    %v647 = vadd.f32 0.0, %v646
    %v648 = vpop.f32.mrb[0].mxu0
    %v649 = vpop.f32.mrb[0].mxu0
    %v650 = vpop.f32.mrb[0].mxu0
    %651 = vdwg.mxu0
    %v652 = vrcp.pop %v602
    %v653 = vmul.f32 %v647, %v652
    %655 = vrot.lane.b32.xlu0 %v653, 16
    %v656 = vpop.permute.xlu0 %655
    %v658 = vsel %vm188, %v541, %v656
    %v659 = vpack.c.bf16 %v658, %v421
    %v660 = vld [vmem:[%s6] sm:$0xf]
    %v661 = vld [vmem:[%s6 + $0x4] sm:$0xf]
    %v662 = vld [vmem:[%s6 + $0x8] sm:$0xf]
    %v663 = vld [vmem:[%s6 + $0xc] sm:$0xf]
    %v664 = vld [vmem:[%s7] sm:$0x1]
    %v666 = vlaneseq
    %v667 = vshrl.u32 %v666, 7
    %v668 = vsub.s32 0, %v667
    %v669 = vrot.slane %v664, %v668
    %v675 = vunpack.c.l.b16 %v660
    %v676 = vunpack.c.l.b16 %v661
    %v677 = vunpack.c.l.b16 %v662
    %v678 = vunpack.c.l.b16 %v663
    %v679 = vpack.c.b16 %v676, %v675
    %v680 = vpack.c.b16 %v678, %v677
    %v684 = vsel %vm71, %v659, 0
    %686 = vmatprep.subr.bf16.mxu0 0
    %687 = vmatpush1.bf16.msra.mxu0 %v679
    %688 = vmatprep.subr.bf16.mxu0 0
    %689 = vmatpush1.bf16.msra.mxu0 %v680
    %690 = vmatprep.subr.bf16.mxu0 0
    %691 = vmatpush1.bf16.msra.mxu0 0
    %692 = vmatprep.subr.bf16.mxu0 0
    %693 = vmatpush1.bf16.msra.mxu0 0
    %694 = vmatprep.subr.bf16.mxu0 0
    %695 = vmatpush1.bf16.msra.mxu0 0
    %696 = vmatprep.subr.bf16.mxu0 0
    %697 = vmatpush1.bf16.msra.mxu0 0
    %698 = vmatprep.subr.bf16.mxu0 0
    %699 = vmatpush1.bf16.msra.mxu0 0
    %700 = vmatprep.subr.bf16.mxu0 0
    %701 = vmatpush1.bf16.msra.mxu0 0
    %702 = vmatprep.subr.bf16.mxu0 0
    %703 = vmatpush1.bf16.msra.mxu0 0
    %704 = vmatprep.subr.bf16.mxu0 0
    %705 = vmatpush1.bf16.msra.mxu0 0
    %706 = vmatprep.subr.bf16.mxu0 0
    %707 = vmatpush1.bf16.msra.mxu0 0
    %708 = vmatprep.subr.bf16.mxu0 0
    %709 = vmatpush1.bf16.msra.mxu0 0
    %710 = vmatprep.subr.bf16.mxu0 0
    %711 = vmatpush1.bf16.msra.mxu0 0
    %712 = vmatprep.subr.bf16.mxu0 0
    %713 = vmatpush1.bf16.msra.mxu0 0
    %714 = vmatprep.subr.bf16.mxu0 0
    %715 = vmatpush1.bf16.msra.mxu0 0
    %716 = vmatprep.subr.bf16.mxu0 0
    %717 = vmatpush1.bf16.msra.mxu0 0
    %718 = vmatprep.mubr.bf16.mxu0 0
    %719 = vmatmul.mubr.bf16.gmra.mrb[0].mxu0 %v684
    %v720 = vpop.f32.mrb[0].mxu0
    %v721 = vadd.f32 %v669, %v720
    %v722 = vpop.f32.mrb[0].mxu0
    %v723 = vpop.f32.mrb[0].mxu0
    %v724 = vadd.f32 %v669, %v723
    %v725 = vpop.f32.mrb[0].mxu0
    %726 = vdwg.mxu0
    %v727 = vadd.f32 %v721, %v113
    %v728 = vadd.f32 %v724, %v114
    %v729 = vld [vmem:[%s8] sm:$0x1]
    %v730 = vld [vmem:[%s9] sm:$0x1]
    %v731 = vsel %vm71, %v727, 0.0
    %732 = vadd.xlane.f32.xlu0 %v731
    %v733 = vpop.xlane.xlu0 %732
    %v734 = vsel %vm71, %v728, 0.0
    %735 = vadd.xlane.f32.xlu0 %v734
    %v736 = vpop.xlane.xlu0 %735
    %v737 = vmul.f32 %v733, %v78
    %v738 = vmul.f32 %v736, %v78
    %v739 = vsub.f32 %v727, %v737
    %v740 = vsub.f32 %v728, %v738
    %v741 = vmul.f32 %v739, %v739
    %v742 = vmul.f32 %v740, %v740
    %v743 = vsel %vm71, %v741, 0.0
    %744 = vadd.xlane.f32.xlu0 %v743
    %v745 = vpop.xlane.xlu0 %744
    %v746 = vsel %vm71, %v742, 0.0
    %747 = vadd.xlane.f32.xlu0 %v746
    %v748 = vpop.xlane.xlu0 %747
    %v749 = vmul.f32 %v745, %v78
    %v750 = vmul.f32 %v748, %v78
    %v751 = vadd.f32 %v749, 1e-05
    %v752 = vadd.f32 %v750, 1e-05
    %v753 = vrsqrt.pop %v751
    %v754 = vrsqrt.pop %v752
    %v755 = vmul.f32 %v739, %v753
    %v756 = vmul.f32 %v740, %v754
    %v758 = vlaneseq
    %v759 = vshrl.u32 %v758, 7
    %v760 = vsub.s32 0, %v759
    %v761 = vrot.slane %v729, %v760
    %v763 = vmul.f32 %v755, %v761
    %v764 = vmul.f32 %v756, %v761
    %v766 = vlaneseq
    %v767 = vshrl.u32 %v766, 7
    %v768 = vsub.s32 0, %v767
    %v769 = vrot.slane %v730, %v768
    %v771 = vadd.f32 %v763, %v769
    %v772 = vadd.f32 %v764, %v769
    %v773 = vpack.c.bf16 %v772, %v771
    %v774 = vld [vmem:[%s10] sm:$0xf]
    %v775 = vld [vmem:[%s10 + $0x4] sm:$0xf]
    %v776 = vld [vmem:[%s10 + $0x8] sm:$0xf]
    %v777 = vld [vmem:[%s10 + $0xc] sm:$0xf]
    %v778 = vld [vmem:[%s11] sm:$0x1]
    %v780 = vlaneseq
    %v781 = vshrl.u32 %v780, 7
    %v782 = vsub.s32 0, %v781
    %v783 = vrot.slane %v778, %v782
    %v789 = vunpack.c.l.b16 %v774
    %v790 = vunpack.c.l.b16 %v775
    %v791 = vunpack.c.l.b16 %v776
    %v792 = vunpack.c.l.b16 %v777
    %v793 = vpack.c.b16 %v790, %v789
    %v794 = vpack.c.b16 %v792, %v791
    %v798 = vsel %vm71, %v773, 0
    %800 = vmatprep.subr.bf16.mxu0 0
    %801 = vmatpush1.bf16.msra.mxu0 %v793
    %802 = vmatprep.subr.bf16.mxu0 0
    %803 = vmatpush1.bf16.msra.mxu0 %v794
    %804 = vmatprep.subr.bf16.mxu0 0
    %805 = vmatpush1.bf16.msra.mxu0 0
    %806 = vmatprep.subr.bf16.mxu0 0
    %807 = vmatpush1.bf16.msra.mxu0 0
    %808 = vmatprep.subr.bf16.mxu0 0
    %809 = vmatpush1.bf16.msra.mxu0 0
    %810 = vmatprep.subr.bf16.mxu0 0
    %811 = vmatpush1.bf16.msra.mxu0 0
    %812 = vmatprep.subr.bf16.mxu0 0
    %813 = vmatpush1.bf16.msra.mxu0 0
    %814 = vmatprep.subr.bf16.mxu0 0
    %815 = vmatpush1.bf16.msra.mxu0 0
    %816 = vmatprep.subr.bf16.mxu0 0
    %817 = vmatpush1.bf16.msra.mxu0 0
    %818 = vmatprep.subr.bf16.mxu0 0
    %819 = vmatpush1.bf16.msra.mxu0 0
    %820 = vmatprep.subr.bf16.mxu0 0
    %821 = vmatpush1.bf16.msra.mxu0 0
    %822 = vmatprep.subr.bf16.mxu0 0
    %823 = vmatpush1.bf16.msra.mxu0 0
    %824 = vmatprep.subr.bf16.mxu0 0
    %825 = vmatpush1.bf16.msra.mxu0 0
    %826 = vmatprep.subr.bf16.mxu0 0
    %827 = vmatpush1.bf16.msra.mxu0 0
    %828 = vmatprep.subr.bf16.mxu0 0
    %829 = vmatpush1.bf16.msra.mxu0 0
    %830 = vmatprep.subr.bf16.mxu0 0
    %831 = vmatpush1.bf16.msra.mxu0 0
    %832 = vmatprep.mubr.bf16.mxu0 0
    %833 = vmatmul.mubr.bf16.gmra.mrb[0].mxu0 %v798
    %v834 = vpop.f32.mrb[0].mxu0
    %v835 = vadd.f32 %v783, %v834
    %v836 = vpop.f32.mrb[0].mxu0
    %v837 = vpop.f32.mrb[0].mxu0
    %v838 = vadd.f32 %v783, %v837
    %v839 = vpop.f32.mrb[0].mxu0
    %840 = vdwg.mxu0
    %v841 = vmul.f32 %v835, %v835
    %v842 = vmul.f32 %v838, %v838
    %v843 = vmul.f32 %v835, %v841
    %v844 = vmul.f32 %v838, %v842
    %v845 = vmul.f32 %v843, 0.044715
    %v846 = vmul.f32 %v844, 0.044715
    %v847 = vadd.f32 %v835, %v845
    %v848 = vadd.f32 %v838, %v846
    %v849 = vmul.f32 %v847, 0.7978846
    %v850 = vmul.f32 %v848, 0.7978846
    %v851 = vtanh.pop %v849
    %v852 = vtanh.pop %v850
    %v853 = vadd.f32 %v851, 1.0
    %v854 = vadd.f32 %v852, 1.0
    %v855 = vmul.f32 %v853, 0.5
    %v856 = vmul.f32 %v854, 0.5
    %v857 = vmul.f32 %v835, %v855
    %v858 = vmul.f32 %v838, %v856
    %v859 = vpack.c.bf16 %v858, %v857
    %v860 = vld [vmem:[%s12] sm:$0xf]
    %v861 = vld [vmem:[%s12 + $0x4] sm:$0xf]
    %v862 = vld [vmem:[%s12 + $0x8] sm:$0xf]
    %v863 = vld [vmem:[%s12 + $0xc] sm:$0xf]
    %v864 = vld [vmem:[%s12 + $0x10] sm:$0xf]
    %v865 = vld [vmem:[%s12 + $0x14] sm:$0xf]
    %v866 = vld [vmem:[%s12 + $0x18] sm:$0xf]
    %v867 = vld [vmem:[%s12 + $0x1c] sm:$0xf]
    %v868 = vld [vmem:[%s13] sm:$0x1]
    %v870 = vlaneseq
    %v871 = vshrl.u32 %v870, 7
    %v872 = vsub.s32 0, %v871
    %v873 = vrot.slane %v868, %v872
    %v883 = vunpack.c.l.b16 %v860
    %v884 = vunpack.c.l.b16 %v861
    %v885 = vunpack.c.l.b16 %v862
    %v886 = vunpack.c.l.b16 %v863
    %v887 = vunpack.c.l.b16 %v864
    %v888 = vunpack.c.l.b16 %v865
    %v889 = vunpack.c.l.b16 %v866
    %v890 = vunpack.c.l.b16 %v867
    %v891 = vpack.c.b16 %v884, %v883
    %v892 = vpack.c.b16 %v886, %v885
    %v893 = vpack.c.b16 %v888, %v887
    %v894 = vpack.c.b16 %v890, %v889
    %vm899 = vcmask 523264
    %v901 = vsel %vm899, %v859, 0
    %903 = vmatprep.subr.bf16.mxu0 0
    %904 = vmatpush1.bf16.msra.mxu0 %v891
    %905 = vmatprep.subr.bf16.mxu0 0
    %906 = vmatpush1.bf16.msra.mxu0 %v892
    %907 = vmatprep.subr.bf16.mxu0 0
    %908 = vmatpush1.bf16.msra.mxu0 %v893
    %909 = vmatprep.subr.bf16.mxu0 0
    %910 = vmatpush1.bf16.msra.mxu0 %v894
    %911 = vmatprep.subr.bf16.mxu0 0
    %912 = vmatpush1.bf16.msra.mxu0 0
    %913 = vmatprep.subr.bf16.mxu0 0
    %914 = vmatpush1.bf16.msra.mxu0 0
    %915 = vmatprep.subr.bf16.mxu0 0
    %916 = vmatpush1.bf16.msra.mxu0 0
    %917 = vmatprep.subr.bf16.mxu0 0
    %918 = vmatpush1.bf16.msra.mxu0 0
    %919 = vmatprep.subr.bf16.mxu0 0
    %920 = vmatpush1.bf16.msra.mxu0 0
    %921 = vmatprep.subr.bf16.mxu0 0
    %922 = vmatpush1.bf16.msra.mxu0 0
    %923 = vmatprep.subr.bf16.mxu0 0
    %924 = vmatpush1.bf16.msra.mxu0 0
    %925 = vmatprep.subr.bf16.mxu0 0
    %926 = vmatpush1.bf16.msra.mxu0 0
    %927 = vmatprep.subr.bf16.mxu0 0
    %928 = vmatpush1.bf16.msra.mxu0 0
    %929 = vmatprep.subr.bf16.mxu0 0
    %930 = vmatpush1.bf16.msra.mxu0 0
    %931 = vmatprep.subr.bf16.mxu0 0
    %932 = vmatpush1.bf16.msra.mxu0 0
    %933 = vmatprep.subr.bf16.mxu0 0
    %934 = vmatpush1.bf16.msra.mxu0 0
    %935 = vmatprep.mubr.bf16.mxu0 0
    %936 = vmatmul.mubr.bf16.gmra.mrb[0].mxu0 %v901
    %v937 = vpop.f32.mrb[0].mxu0
    %v938 = vadd.f32 %v873, %v937
    %v939 = vpop.f32.mrb[0].mxu0
    %v940 = vpop.f32.mrb[0].mxu0
    %v941 = vadd.f32 %v873, %v940
    %v942 = vpop.f32.mrb[0].mxu0
    %943 = vdwg.mxu0
    %v944 = vadd.f32 %v938, %v771
    %v945 = vadd.f32 %v941, %v772
    %v946 = vld [vmem:[%s14] sm:$0x1]
    %v947 = vld [vmem:[%s15] sm:$0x1]
    %v948 = vsel %vm71, %v944, 0.0
    %949 = vadd.xlane.f32.xlu0 %v948
    %v950 = vpop.xlane.xlu0 %949
    %v951 = vsel %vm71, %v945, 0.0
    %952 = vadd.xlane.f32.xlu0 %v951
    %v953 = vpop.xlane.xlu0 %952
    %v954 = vmul.f32 %v950, %v78
    %v955 = vmul.f32 %v953, %v78
    %v956 = vsub.f32 %v944, %v954
    %v957 = vsub.f32 %v945, %v955
    %v958 = vmul.f32 %v956, %v956
    %v959 = vmul.f32 %v957, %v957
    %v960 = vsel %vm71, %v958, 0.0
    %961 = vadd.xlane.f32.xlu0 %v960
    %v962 = vpop.xlane.xlu0 %961
    %v963 = vsel %vm71, %v959, 0.0
    %964 = vadd.xlane.f32.xlu0 %v963
    %v965 = vpop.xlane.xlu0 %964
    %v966 = vmul.f32 %v962, %v78
    %v967 = vmul.f32 %v965, %v78
    %v968 = vadd.f32 %v966, 1e-05
    %v969 = vadd.f32 %v967, 1e-05
    %v970 = vrsqrt.pop %v968
    %v971 = vrsqrt.pop %v969
    %v972 = vmul.f32 %v956, %v970
    %v973 = vmul.f32 %v957, %v971
    %v975 = vlaneseq
    %v976 = vshrl.u32 %v975, 7
    %v977 = vsub.s32 0, %v976
    %v978 = vrot.slane %v946, %v977
    %v980 = vmul.f32 %v972, %v978
    %v981 = vmul.f32 %v973, %v978
    %v983 = vlaneseq
    %v984 = vshrl.u32 %v983, 7
    %v985 = vsub.s32 0, %v984
    %v986 = vrot.slane %v947, %v985
    %v988 = vadd.f32 %v980, %v986
    %v989 = vadd.f32 %v981, %v986
    %v990 = vpack.c.bf16 %v989, %v988
    %s991 = scalar_lea.vmem %s4, 16
    %v992 = vld [vmem:[%s991] sm:$0xf]
    %v993 = vld [vmem:[%s991 + $0x4] sm:$0xf]
    %v994 = vld [vmem:[%s991 + $0x8] sm:$0xf]
    %v995 = vld [vmem:[%s991 + $0xc] sm:$0xf]
    %s996 = scalar_lea.vmem %s5, 1
    %v997 = vld [vmem:[%s996] sm:$0x1]
    %v999 = vlaneseq
    %v1000 = vshrl.u32 %v999, 7
    %v1001 = vsub.s32 0, %v1000
    %v1002 = vrot.slane %v997, %v1001
    %v1008 = vunpack.c.l.b16 %v992
    %v1009 = vunpack.c.l.b16 %v993
    %v1010 = vunpack.c.l.b16 %v994
    %v1011 = vunpack.c.l.b16 %v995
    %v1012 = vpack.c.b16 %v1009, %v1008
    %v1013 = vpack.c.b16 %v1011, %v1010
    %v1017 = vsel %vm71, %v990, 0
    %1019 = vmatprep.subr.bf16.mxu0 0
    %1020 = vmatpush1.bf16.msra.mxu0 %v1012
    %1021 = vmatprep.subr.bf16.mxu0 0
    %1022 = vmatpush1.bf16.msra.mxu0 %v1013
    %1023 = vmatprep.subr.bf16.mxu0 0
    %1024 = vmatpush1.bf16.msra.mxu0 0
    %1025 = vmatprep.subr.bf16.mxu0 0
    %1026 = vmatpush1.bf16.msra.mxu0 0
    %1027 = vmatprep.subr.bf16.mxu0 0
    %1028 = vmatpush1.bf16.msra.mxu0 0
    %1029 = vmatprep.subr.bf16.mxu0 0
    %1030 = vmatpush1.bf16.msra.mxu0 0
    %1031 = vmatprep.subr.bf16.mxu0 0
    %1032 = vmatpush1.bf16.msra.mxu0 0
    %1033 = vmatprep.subr.bf16.mxu0 0
    %1034 = vmatpush1.bf16.msra.mxu0 0
    %1035 = vmatprep.subr.bf16.mxu0 0
    %1036 = vmatpush1.bf16.msra.mxu0 0
    %1037 = vmatprep.subr.bf16.mxu0 0
    %1038 = vmatpush1.bf16.msra.mxu0 0
    %1039 = vmatprep.subr.bf16.mxu0 0
    %1040 = vmatpush1.bf16.msra.mxu0 0
    %1041 = vmatprep.subr.bf16.mxu0 0
    %1042 = vmatpush1.bf16.msra.mxu0 0
    %1043 = vmatprep.subr.bf16.mxu0 0
    %1044 = vmatpush1.bf16.msra.mxu0 0
    %1045 = vmatprep.subr.bf16.mxu0 0
    %1046 = vmatpush1.bf16.msra.mxu0 0
    %1047 = vmatprep.subr.bf16.mxu0 0
    %1048 = vmatpush1.bf16.msra.mxu0 0
    %1049 = vmatprep.subr.bf16.mxu0 0
    %1050 = vmatpush1.bf16.msra.mxu0 0
    %1051 = vmatprep.mubr.bf16.mxu0 0
    %1052 = vmatmul.mubr.bf16.gmra.mrb[0].mxu0 %v1017
    %v1053 = vpop.f32.mrb[0].mxu0
    %v1054 = vadd.f32 %v1002, %v1053
    %v1055 = vpop.f32.mrb[0].mxu0
    %v1056 = vpop.f32.mrb[0].mxu0
    %v1057 = vadd.f32 %v1002, %v1056
    %v1058 = vpop.f32.mrb[0].mxu0
    %1059 = vdwg.mxu0
    %v1060 = vpack.c.bf16 %v1054, %v1054
    %1062 = vrot.lane.b32.xlu0 %v1060, 96
    %v1063 = vpop.permute.xlu0 %1062
    %v1065 = vsel %vm188, %v1060, 0
    %v1068 = vsel %vm188, %v1063, 0
    %1070 = vmatprep.subr.bf16.mxu0 0
    %1071 = vmatpush1.bf16.xpose.msra.mxu0 %v1068
    %1072 = vmatprep.subr.bf16.mxu0 0
    %1073 = vmatpush1.bf16.xpose.msra.mxu0 0
    %1074 = vmatprep.subr.bf16.mxu0 0
    %1075 = vmatpush1.bf16.xpose.msra.mxu0 0
    %1076 = vmatprep.subr.bf16.mxu0 0
    %1077 = vmatpush1.bf16.xpose.msra.mxu0 0
    %1078 = vmatprep.subr.bf16.mxu0 0
    %1079 = vmatpush1.bf16.xpose.msra.mxu0 0
    %1080 = vmatprep.subr.bf16.mxu0 0
    %1081 = vmatpush1.bf16.xpose.msra.mxu0 0
    %1082 = vmatprep.subr.bf16.mxu0 0
    %1083 = vmatpush1.bf16.xpose.msra.mxu0 0
    %1084 = vmatprep.subr.bf16.mxu0 0
    %1085 = vmatpush1.bf16.xpose.msra.mxu0 0
    %1086 = vmatprep.subr.bf16.mxu0 0
    %1087 = vmatpush1.bf16.xpose.msra.mxu0 0
    %1088 = vmatprep.subr.bf16.mxu0 0
    %1089 = vmatpush1.bf16.xpose.msra.mxu0 0
    %1090 = vmatprep.subr.bf16.mxu0 0
    %1091 = vmatpush1.bf16.xpose.msra.mxu0 0
    %1092 = vmatprep.subr.bf16.mxu0 0
    %1093 = vmatpush1.bf16.xpose.msra.mxu0 0
    %1094 = vmatprep.subr.bf16.mxu0 0
    %1095 = vmatpush1.bf16.xpose.msra.mxu0 0
    %1096 = vmatprep.subr.bf16.mxu0 0
    %1097 = vmatpush1.bf16.xpose.msra.mxu0 0
    %1098 = vmatprep.subr.bf16.mxu0 0
    %1099 = vmatpush1.bf16.xpose.msra.mxu0 0
    %1100 = vmatprep.subr.bf16.mxu0 0
    %1101 = vmatpush1.bf16.xpose.msra.mxu0 0
    %1102 = vmatprep.mubr.bf16.mxu0 0
    %1103 = vmatmul.mubr.bf16.gmra.mrb[0].mxu0 %v1065
    %v1104 = vpop.f32.mrb[0].mxu0
    %v1105 = vadd.f32 0.0, %v1104
    %v1106 = vpop.f32.mrb[0].mxu0
    %v1107 = vpop.f32.mrb[0].mxu0
    %v1108 = vpop.f32.mrb[0].mxu0
    %1109 = vdwg.mxu0
    %v1110 = vmul.f32 %v1105, 0.25
    %v1111 = vadd.f32 %v1110, %v240
    %v1112 = vsel %vm243, %v1111, -inf
    %1113 = vmax.xlane.f32.xlu0 %v1112
    %v1114 = vpop.xlane.xlu0 %1113
    %v1115 = vsub.f32 %v1111, %v1114
    %v1116 = vmul.f32 %v1115, 1.442695
    %v1117 = vpow.pop %v1116
    %v1118 = vsel %vm243, %v1117, 0.0
    %1119 = vadd.xlane.f32.xlu0 %v1118
    %v1120 = vpop.xlane.xlu0 %1119
    %v1121 = vpack.c.bf16 %v1117, %v1117
    %1122 = vrot.lane.b32.xlu0 %v1060, 64
    %v1123 = vpop.permute.xlu0 %1122
    %v1125 = vsel %vm243, %v1121, 0
    %v1128 = vsel %vm259, %v1123, 0
    %1130 = vmatprep.subr.bf16.mxu0 0
    %1131 = vmatpush1.bf16.msra.mxu0 %v1128
    %1132 = vmatprep.subr.bf16.mxu0 0
    %1133 = vmatpush1.bf16.msra.mxu0 0
    %1134 = vmatprep.subr.bf16.mxu0 0
    %1135 = vmatpush1.bf16.msra.mxu0 0
    %1136 = vmatprep.subr.bf16.mxu0 0
    %1137 = vmatpush1.bf16.msra.mxu0 0
    %1138 = vmatprep.subr.bf16.mxu0 0
    %1139 = vmatpush1.bf16.msra.mxu0 0
    %1140 = vmatprep.subr.bf16.mxu0 0
    %1141 = vmatpush1.bf16.msra.mxu0 0
    %1142 = vmatprep.subr.bf16.mxu0 0
    %1143 = vmatpush1.bf16.msra.mxu0 0
    %1144 = vmatprep.subr.bf16.mxu0 0
    %1145 = vmatpush1.bf16.msra.mxu0 0
    %1146 = vmatprep.subr.bf16.mxu0 0
    %1147 = vmatpush1.bf16.msra.mxu0 0
    %1148 = vmatprep.subr.bf16.mxu0 0
    %1149 = vmatpush1.bf16.msra.mxu0 0
    %1150 = vmatprep.subr.bf16.mxu0 0
    %1151 = vmatpush1.bf16.msra.mxu0 0
    %1152 = vmatprep.subr.bf16.mxu0 0
    %1153 = vmatpush1.bf16.msra.mxu0 0
    %1154 = vmatprep.subr.bf16.mxu0 0
    %1155 = vmatpush1.bf16.msra.mxu0 0
    %1156 = vmatprep.subr.bf16.mxu0 0
    %1157 = vmatpush1.bf16.msra.mxu0 0
    %1158 = vmatprep.subr.bf16.mxu0 0
    %1159 = vmatpush1.bf16.msra.mxu0 0
    %1160 = vmatprep.subr.bf16.mxu0 0
    %1161 = vmatpush1.bf16.msra.mxu0 0
    %1162 = vmatprep.mubr.bf16.mxu0 0
    %1163 = vmatmul.mubr.bf16.gmra.mrb[0].mxu0 %v1125
    %v1164 = vpop.f32.mrb[0].mxu0
    %v1165 = vadd.f32 0.0, %v1164
    %v1166 = vpop.f32.mrb[0].mxu0
    %v1167 = vpop.f32.mrb[0].mxu0
    %v1168 = vpop.f32.mrb[0].mxu0
    %1169 = vdwg.mxu0
    %v1170 = vrcp.pop %v1120
    %v1171 = vmul.f32 %v1165, %v1170
    %1172 = vrot.lane.b32.xlu0 %v1060, 112
    %v1173 = vpop.permute.xlu0 %1172
    %1174 = vrot.lane.b32.xlu0 %v1060, 80
    %v1175 = vpop.permute.xlu0 %1174
    %v1177 = vsel %vm188, %v1173, 0
    %v1180 = vsel %vm188, %v1175, 0
    %1182 = vmatprep.subr.bf16.mxu0 0
    %1183 = vmatpush1.bf16.xpose.msra.mxu0 %v1180
    %1184 = vmatprep.subr.bf16.mxu0 0
    %1185 = vmatpush1.bf16.xpose.msra.mxu0 0
    %1186 = vmatprep.subr.bf16.mxu0 0
    %1187 = vmatpush1.bf16.xpose.msra.mxu0 0
    %1188 = vmatprep.subr.bf16.mxu0 0
    %1189 = vmatpush1.bf16.xpose.msra.mxu0 0
    %1190 = vmatprep.subr.bf16.mxu0 0
    %1191 = vmatpush1.bf16.xpose.msra.mxu0 0
    %1192 = vmatprep.subr.bf16.mxu0 0
    %1193 = vmatpush1.bf16.xpose.msra.mxu0 0
    %1194 = vmatprep.subr.bf16.mxu0 0
    %1195 = vmatpush1.bf16.xpose.msra.mxu0 0
    %1196 = vmatprep.subr.bf16.mxu0 0
    %1197 = vmatpush1.bf16.xpose.msra.mxu0 0
    %1198 = vmatprep.subr.bf16.mxu0 0
    %1199 = vmatpush1.bf16.xpose.msra.mxu0 0
    %1200 = vmatprep.subr.bf16.mxu0 0
    %1201 = vmatpush1.bf16.xpose.msra.mxu0 0
    %1202 = vmatprep.subr.bf16.mxu0 0
    %1203 = vmatpush1.bf16.xpose.msra.mxu0 0
    %1204 = vmatprep.subr.bf16.mxu0 0
    %1205 = vmatpush1.bf16.xpose.msra.mxu0 0
    %1206 = vmatprep.subr.bf16.mxu0 0
    %1207 = vmatpush1.bf16.xpose.msra.mxu0 0
    %1208 = vmatprep.subr.bf16.mxu0 0
    %1209 = vmatpush1.bf16.xpose.msra.mxu0 0
    %1210 = vmatprep.subr.bf16.mxu0 0
    %1211 = vmatpush1.bf16.xpose.msra.mxu0 0
    %1212 = vmatprep.subr.bf16.mxu0 0
    %1213 = vmatpush1.bf16.xpose.msra.mxu0 0
    %1214 = vmatprep.mubr.bf16.mxu0 0
    %1215 = vmatmul.mubr.bf16.gmra.mrb[0].mxu0 %v1177
    %v1216 = vpop.f32.mrb[0].mxu0
    %v1217 = vadd.f32 0.0, %v1216
    %v1218 = vpop.f32.mrb[0].mxu0
    %v1219 = vpop.f32.mrb[0].mxu0
    %v1220 = vpop.f32.mrb[0].mxu0
    %1221 = vdwg.mxu0
    %v1222 = vmul.f32 %v1217, 0.25
    %v1223 = vadd.f32 %v1222, %v240
    %v1224 = vsel %vm243, %v1223, -inf
    %1225 = vmax.xlane.f32.xlu0 %v1224
    %v1226 = vpop.xlane.xlu0 %1225
    %v1227 = vsub.f32 %v1223, %v1226
    %v1228 = vmul.f32 %v1227, 1.442695
    %v1229 = vpow.pop %v1228
    %v1230 = vsel %vm243, %v1229, 0.0
    %1231 = vadd.xlane.f32.xlu0 %v1230
    %v1232 = vpop.xlane.xlu0 %1231
    %v1233 = vpack.c.bf16 %v1229, %v1229
    %1234 = vrot.lane.b32.xlu0 %v1060, 48
    %v1235 = vpop.permute.xlu0 %1234
    %v1237 = vsel %vm243, %v1233, 0
    %v1240 = vsel %vm259, %v1235, 0
    %1242 = vmatprep.subr.bf16.mxu0 0
    %1243 = vmatpush1.bf16.msra.mxu0 %v1240
    %1244 = vmatprep.subr.bf16.mxu0 0
    %1245 = vmatpush1.bf16.msra.mxu0 0
    %1246 = vmatprep.subr.bf16.mxu0 0
    %1247 = vmatpush1.bf16.msra.mxu0 0
    %1248 = vmatprep.subr.bf16.mxu0 0
    %1249 = vmatpush1.bf16.msra.mxu0 0
    %1250 = vmatprep.subr.bf16.mxu0 0
    %1251 = vmatpush1.bf16.msra.mxu0 0
    %1252 = vmatprep.subr.bf16.mxu0 0
    %1253 = vmatpush1.bf16.msra.mxu0 0
    %1254 = vmatprep.subr.bf16.mxu0 0
    %1255 = vmatpush1.bf16.msra.mxu0 0
    %1256 = vmatprep.subr.bf16.mxu0 0
    %1257 = vmatpush1.bf16.msra.mxu0 0
    %1258 = vmatprep.subr.bf16.mxu0 0
    %1259 = vmatpush1.bf16.msra.mxu0 0
    %1260 = vmatprep.subr.bf16.mxu0 0
    %1261 = vmatpush1.bf16.msra.mxu0 0
    %1262 = vmatprep.subr.bf16.mxu0 0
    %1263 = vmatpush1.bf16.msra.mxu0 0
    %1264 = vmatprep.subr.bf16.mxu0 0
    %1265 = vmatpush1.bf16.msra.mxu0 0
    %1266 = vmatprep.subr.bf16.mxu0 0
    %1267 = vmatpush1.bf16.msra.mxu0 0
    %1268 = vmatprep.subr.bf16.mxu0 0
    %1269 = vmatpush1.bf16.msra.mxu0 0
    %1270 = vmatprep.subr.bf16.mxu0 0
    %1271 = vmatpush1.bf16.msra.mxu0 0
    %1272 = vmatprep.subr.bf16.mxu0 0
    %1273 = vmatpush1.bf16.msra.mxu0 0
    %1274 = vmatprep.mubr.bf16.mxu0 0
    %1275 = vmatmul.mubr.bf16.gmra.mrb[0].mxu0 %v1237
    %v1276 = vpop.f32.mrb[0].mxu0
    %v1277 = vadd.f32 0.0, %v1276
    %v1278 = vpop.f32.mrb[0].mxu0
    %v1279 = vpop.f32.mrb[0].mxu0
    %v1280 = vpop.f32.mrb[0].mxu0
    %1281 = vdwg.mxu0
    %v1282 = vrcp.pop %v1232
    %v1283 = vmul.f32 %v1277, %v1282
    %1285 = vrot.lane.b32.xlu0 %v1283, 16
    %v1286 = vpop.permute.xlu0 %1285
    %v1288 = vsel %vm188, %v1171, %v1286
    %v1289 = vpack.c.bf16 %v1057, %v1057
    %1291 = vrot.lane.b32.xlu0 %v1289, 96
    %v1292 = vpop.permute.xlu0 %1291
    %v1294 = vsel %vm188, %v1289, 0
    %v1297 = vsel %vm188, %v1292, 0
    %1299 = vmatprep.subr.bf16.mxu0 0
    %1300 = vmatpush1.bf16.xpose.msra.mxu0 %v1297
    %1301 = vmatprep.subr.bf16.mxu0 0
    %1302 = vmatpush1.bf16.xpose.msra.mxu0 0
    %1303 = vmatprep.subr.bf16.mxu0 0
    %1304 = vmatpush1.bf16.xpose.msra.mxu0 0
    %1305 = vmatprep.subr.bf16.mxu0 0
    %1306 = vmatpush1.bf16.xpose.msra.mxu0 0
    %1307 = vmatprep.subr.bf16.mxu0 0
    %1308 = vmatpush1.bf16.xpose.msra.mxu0 0
    %1309 = vmatprep.subr.bf16.mxu0 0
    %1310 = vmatpush1.bf16.xpose.msra.mxu0 0
    %1311 = vmatprep.subr.bf16.mxu0 0
    %1312 = vmatpush1.bf16.xpose.msra.mxu0 0
    %1313 = vmatprep.subr.bf16.mxu0 0
    %1314 = vmatpush1.bf16.xpose.msra.mxu0 0
    %1315 = vmatprep.subr.bf16.mxu0 0
    %1316 = vmatpush1.bf16.xpose.msra.mxu0 0
    %1317 = vmatprep.subr.bf16.mxu0 0
    %1318 = vmatpush1.bf16.xpose.msra.mxu0 0
    %1319 = vmatprep.subr.bf16.mxu0 0
    %1320 = vmatpush1.bf16.xpose.msra.mxu0 0
    %1321 = vmatprep.subr.bf16.mxu0 0
    %1322 = vmatpush1.bf16.xpose.msra.mxu0 0
    %1323 = vmatprep.subr.bf16.mxu0 0
    %1324 = vmatpush1.bf16.xpose.msra.mxu0 0
    %1325 = vmatprep.subr.bf16.mxu0 0
    %1326 = vmatpush1.bf16.xpose.msra.mxu0 0
    %1327 = vmatprep.subr.bf16.mxu0 0
    %1328 = vmatpush1.bf16.xpose.msra.mxu0 0
    %1329 = vmatprep.subr.bf16.mxu0 0
    %1330 = vmatpush1.bf16.xpose.msra.mxu0 0
    %1331 = vmatprep.mubr.bf16.mxu0 0
    %1332 = vmatmul.mubr.bf16.gmra.mrb[0].mxu0 %v1294
    %v1333 = vpop.f32.mrb[0].mxu0
    %v1334 = vadd.f32 0.0, %v1333
    %v1335 = vpop.f32.mrb[0].mxu0
    %v1336 = vpop.f32.mrb[0].mxu0
    %v1337 = vpop.f32.mrb[0].mxu0
    %1338 = vdwg.mxu0
    %v1339 = vmul.f32 %v1334, 0.25
    %v1340 = vadd.f32 %v1339, %v479
    %v1341 = vsel %vm243, %v1340, -inf
    %1342 = vmax.xlane.f32.xlu0 %v1341
    %v1343 = vpop.xlane.xlu0 %1342
    %v1344 = vsub.f32 %v1340, %v1343
    %v1345 = vmul.f32 %v1344, 1.442695
    %v1346 = vpow.pop %v1345
    %v1347 = vsel %vm243, %v1346, 0.0
    %1348 = vadd.xlane.f32.xlu0 %v1347
    %v1349 = vpop.xlane.xlu0 %1348
    %v1350 = vpack.c.bf16 %v1346, %v1346
    %1351 = vrot.lane.b32.xlu0 %v1289, 64
    %v1352 = vpop.permute.xlu0 %1351
    %v1354 = vsel %vm243, %v1350, 0
    %v1357 = vsel %vm259, %v1352, 0
    %1359 = vmatprep.subr.bf16.mxu0 0
    %1360 = vmatpush1.bf16.msra.mxu0 %v1357
    %1361 = vmatprep.subr.bf16.mxu0 0
    %1362 = vmatpush1.bf16.msra.mxu0 0
    %1363 = vmatprep.subr.bf16.mxu0 0
    %1364 = vmatpush1.bf16.msra.mxu0 0
    %1365 = vmatprep.subr.bf16.mxu0 0
    %1366 = vmatpush1.bf16.msra.mxu0 0
    %1367 = vmatprep.subr.bf16.mxu0 0
    %1368 = vmatpush1.bf16.msra.mxu0 0
    %1369 = vmatprep.subr.bf16.mxu0 0
    %1370 = vmatpush1.bf16.msra.mxu0 0
    %1371 = vmatprep.subr.bf16.mxu0 0
    %1372 = vmatpush1.bf16.msra.mxu0 0
    %1373 = vmatprep.subr.bf16.mxu0 0
    %1374 = vmatpush1.bf16.msra.mxu0 0
    %1375 = vmatprep.subr.bf16.mxu0 0
    %1376 = vmatpush1.bf16.msra.mxu0 0
    %1377 = vmatprep.subr.bf16.mxu0 0
    %1378 = vmatpush1.bf16.msra.mxu0 0
    %1379 = vmatprep.subr.bf16.mxu0 0
    %1380 = vmatpush1.bf16.msra.mxu0 0
    %1381 = vmatprep.subr.bf16.mxu0 0
    %1382 = vmatpush1.bf16.msra.mxu0 0
    %1383 = vmatprep.subr.bf16.mxu0 0
    %1384 = vmatpush1.bf16.msra.mxu0 0
    %1385 = vmatprep.subr.bf16.mxu0 0
    %1386 = vmatpush1.bf16.msra.mxu0 0
    %1387 = vmatprep.subr.bf16.mxu0 0
    %1388 = vmatpush1.bf16.msra.mxu0 0
    %1389 = vmatprep.subr.bf16.mxu0 0
    %1390 = vmatpush1.bf16.msra.mxu0 0
    %1391 = vmatprep.mubr.bf16.mxu0 0
    %1392 = vmatmul.mubr.bf16.gmra.mrb[0].mxu0 %v1354
    %v1393 = vpop.f32.mrb[0].mxu0
    %v1394 = vadd.f32 0.0, %v1393
    %v1395 = vpop.f32.mrb[0].mxu0
    %v1396 = vpop.f32.mrb[0].mxu0
    %v1397 = vpop.f32.mrb[0].mxu0
    %1398 = vdwg.mxu0
    %v1399 = vrcp.pop %v1349
    %v1400 = vmul.f32 %v1394, %v1399
    %1401 = vrot.lane.b32.xlu0 %v1289, 112
    %v1402 = vpop.permute.xlu0 %1401
    %1403 = vrot.lane.b32.xlu0 %v1289, 80
    %v1404 = vpop.permute.xlu0 %1403
    %v1406 = vsel %vm188, %v1402, 0
    %v1409 = vsel %vm188, %v1404, 0
    %1411 = vmatprep.subr.bf16.mxu0 0
    %1412 = vmatpush1.bf16.xpose.msra.mxu0 %v1409
    %1413 = vmatprep.subr.bf16.mxu0 0
    %1414 = vmatpush1.bf16.xpose.msra.mxu0 0
    %1415 = vmatprep.subr.bf16.mxu0 0
    %1416 = vmatpush1.bf16.xpose.msra.mxu0 0
    %1417 = vmatprep.subr.bf16.mxu0 0
    %1418 = vmatpush1.bf16.xpose.msra.mxu0 0
    %1419 = vmatprep.subr.bf16.mxu0 0
    %1420 = vmatpush1.bf16.xpose.msra.mxu0 0
    %1421 = vmatprep.subr.bf16.mxu0 0
    %1422 = vmatpush1.bf16.xpose.msra.mxu0 0
    %1423 = vmatprep.subr.bf16.mxu0 0
    %1424 = vmatpush1.bf16.xpose.msra.mxu0 0
    %1425 = vmatprep.subr.bf16.mxu0 0
    %1426 = vmatpush1.bf16.xpose.msra.mxu0 0
    %1427 = vmatprep.subr.bf16.mxu0 0
    %1428 = vmatpush1.bf16.xpose.msra.mxu0 0
    %1429 = vmatprep.subr.bf16.mxu0 0
    %1430 = vmatpush1.bf16.xpose.msra.mxu0 0
    %1431 = vmatprep.subr.bf16.mxu0 0
    %1432 = vmatpush1.bf16.xpose.msra.mxu0 0
    %1433 = vmatprep.subr.bf16.mxu0 0
    %1434 = vmatpush1.bf16.xpose.msra.mxu0 0
    %1435 = vmatprep.subr.bf16.mxu0 0
    %1436 = vmatpush1.bf16.xpose.msra.mxu0 0
    %1437 = vmatprep.subr.bf16.mxu0 0
    %1438 = vmatpush1.bf16.xpose.msra.mxu0 0
    %1439 = vmatprep.subr.bf16.mxu0 0
    %1440 = vmatpush1.bf16.xpose.msra.mxu0 0
    %1441 = vmatprep.subr.bf16.mxu0 0
    %1442 = vmatpush1.bf16.xpose.msra.mxu0 0
    %1443 = vmatprep.mubr.bf16.mxu0 0
    %1444 = vmatmul.mubr.bf16.gmra.mrb[0].mxu0 %v1406
    %v1445 = vpop.f32.mrb[0].mxu0
    %v1446 = vadd.f32 0.0, %v1445
    %v1447 = vpop.f32.mrb[0].mxu0
    %v1448 = vpop.f32.mrb[0].mxu0
    %v1449 = vpop.f32.mrb[0].mxu0
    %1450 = vdwg.mxu0
    %v1451 = vmul.f32 %v1446, 0.25
    %v1452 = vadd.f32 %v1451, %v479
    %v1453 = vsel %vm243, %v1452, -inf
    %1454 = vmax.xlane.f32.xlu0 %v1453
    %v1455 = vpop.xlane.xlu0 %1454
    %v1456 = vsub.f32 %v1452, %v1455
    %v1457 = vmul.f32 %v1456, 1.442695
    %v1458 = vpow.pop %v1457
    %v1459 = vsel %vm243, %v1458, 0.0
    %1460 = vadd.xlane.f32.xlu0 %v1459
    %v1461 = vpop.xlane.xlu0 %1460
    %v1462 = vpack.c.bf16 %v1458, %v1458
    %1463 = vrot.lane.b32.xlu0 %v1289, 48
    %v1464 = vpop.permute.xlu0 %1463
    %v1466 = vsel %vm243, %v1462, 0
    %v1469 = vsel %vm259, %v1464, 0
    %1471 = vmatprep.subr.bf16.mxu0 0
    %1472 = vmatpush1.bf16.msra.mxu0 %v1469
    %1473 = vmatprep.subr.bf16.mxu0 0
    %1474 = vmatpush1.bf16.msra.mxu0 0
    %1475 = vmatprep.subr.bf16.mxu0 0
    %1476 = vmatpush1.bf16.msra.mxu0 0
    %1477 = vmatprep.subr.bf16.mxu0 0
    %1478 = vmatpush1.bf16.msra.mxu0 0
    %1479 = vmatprep.subr.bf16.mxu0 0
    %1480 = vmatpush1.bf16.msra.mxu0 0
    %1481 = vmatprep.subr.bf16.mxu0 0
    %1482 = vmatpush1.bf16.msra.mxu0 0
    %1483 = vmatprep.subr.bf16.mxu0 0
    %1484 = vmatpush1.bf16.msra.mxu0 0
    %1485 = vmatprep.subr.bf16.mxu0 0
    %1486 = vmatpush1.bf16.msra.mxu0 0
    %1487 = vmatprep.subr.bf16.mxu0 0
    %1488 = vmatpush1.bf16.msra.mxu0 0
    %1489 = vmatprep.subr.bf16.mxu0 0
    %1490 = vmatpush1.bf16.msra.mxu0 0
    %1491 = vmatprep.subr.bf16.mxu0 0
    %1492 = vmatpush1.bf16.msra.mxu0 0
    %1493 = vmatprep.subr.bf16.mxu0 0
    %1494 = vmatpush1.bf16.msra.mxu0 0
    %1495 = vmatprep.subr.bf16.mxu0 0
    %1496 = vmatpush1.bf16.msra.mxu0 0
    %1497 = vmatprep.subr.bf16.mxu0 0
    %1498 = vmatpush1.bf16.msra.mxu0 0
    %1499 = vmatprep.subr.bf16.mxu0 0
    %1500 = vmatpush1.bf16.msra.mxu0 0
    %1501 = vmatprep.subr.bf16.mxu0 0
    %1502 = vmatpush1.bf16.msra.mxu0 0
    %1503 = vmatprep.mubr.bf16.mxu0 0
    %1504 = vmatmul.mubr.bf16.gmra.mrb[0].mxu0 %v1466
    %v1505 = vpop.f32.mrb[0].mxu0
    %v1506 = vadd.f32 0.0, %v1505
    %v1507 = vpop.f32.mrb[0].mxu0
    %v1508 = vpop.f32.mrb[0].mxu0
    %v1509 = vpop.f32.mrb[0].mxu0
    %1510 = vdwg.mxu0
    %v1511 = vrcp.pop %v1461
    %v1512 = vmul.f32 %v1506, %v1511
    %1514 = vrot.lane.b32.xlu0 %v1512, 16
    %v1515 = vpop.permute.xlu0 %1514
    %v1517 = vsel %vm188, %v1400, %v1515
    %v1518 = vpack.c.bf16 %v1517, %v1288
    %s1519 = scalar_lea.vmem %s6, 16
    %v1520 = vld [vmem:[%s1519] sm:$0xf]
    %v1521 = vld [vmem:[%s1519 + $0x4] sm:$0xf]
    %v1522 = vld [vmem:[%s1519 + $0x8] sm:$0xf]
    %v1523 = vld [vmem:[%s1519 + $0xc] sm:$0xf]
    %s1524 = scalar_lea.vmem %s7, 1
    %v1525 = vld [vmem:[%s1524] sm:$0x1]
    %v1527 = vlaneseq
    %v1528 = vshrl.u32 %v1527, 7
    %v1529 = vsub.s32 0, %v1528
    %v1530 = vrot.slane %v1525, %v1529
    %v1536 = vunpack.c.l.b16 %v1520
    %v1537 = vunpack.c.l.b16 %v1521
    %v1538 = vunpack.c.l.b16 %v1522
    %v1539 = vunpack.c.l.b16 %v1523
    %v1540 = vpack.c.b16 %v1537, %v1536
    %v1541 = vpack.c.b16 %v1539, %v1538
    %v1545 = vsel %vm71, %v1518, 0
    %1547 = vmatprep.subr.bf16.mxu0 0
    %1548 = vmatpush1.bf16.msra.mxu0 %v1540
    %1549 = vmatprep.subr.bf16.mxu0 0
    %1550 = vmatpush1.bf16.msra.mxu0 %v1541
    %1551 = vmatprep.subr.bf16.mxu0 0
    %1552 = vmatpush1.bf16.msra.mxu0 0
    %1553 = vmatprep.subr.bf16.mxu0 0
    %1554 = vmatpush1.bf16.msra.mxu0 0
    %1555 = vmatprep.subr.bf16.mxu0 0
    %1556 = vmatpush1.bf16.msra.mxu0 0
    %1557 = vmatprep.subr.bf16.mxu0 0
    %1558 = vmatpush1.bf16.msra.mxu0 0
    %1559 = vmatprep.subr.bf16.mxu0 0
    %1560 = vmatpush1.bf16.msra.mxu0 0
    %1561 = vmatprep.subr.bf16.mxu0 0
    %1562 = vmatpush1.bf16.msra.mxu0 0
    %1563 = vmatprep.subr.bf16.mxu0 0
    %1564 = vmatpush1.bf16.msra.mxu0 0
    %1565 = vmatprep.subr.bf16.mxu0 0
    %1566 = vmatpush1.bf16.msra.mxu0 0
    %1567 = vmatprep.subr.bf16.mxu0 0
    %1568 = vmatpush1.bf16.msra.mxu0 0
    %1569 = vmatprep.subr.bf16.mxu0 0
    %1570 = vmatpush1.bf16.msra.mxu0 0
    %1571 = vmatprep.subr.bf16.mxu0 0
    %1572 = vmatpush1.bf16.msra.mxu0 0
    %1573 = vmatprep.subr.bf16.mxu0 0
    %1574 = vmatpush1.bf16.msra.mxu0 0
    %1575 = vmatprep.subr.bf16.mxu0 0
    %1576 = vmatpush1.bf16.msra.mxu0 0
    %1577 = vmatprep.subr.bf16.mxu0 0
    %1578 = vmatpush1.bf16.msra.mxu0 0
    %1579 = vmatprep.mubr.bf16.mxu0 0
    %1580 = vmatmul.mubr.bf16.gmra.mrb[0].mxu0 %v1545
    %v1581 = vpop.f32.mrb[0].mxu0
    %v1582 = vadd.f32 %v1530, %v1581
    %v1583 = vpop.f32.mrb[0].mxu0
    %v1584 = vpop.f32.mrb[0].mxu0
    %v1585 = vadd.f32 %v1530, %v1584
    %v1586 = vpop.f32.mrb[0].mxu0
    %1587 = vdwg.mxu0
    %v1588 = vadd.f32 %v1582, %v988
    %v1589 = vadd.f32 %v1585, %v989
    %s1590 = scalar_lea.vmem %s8, 1
    %v1591 = vld [vmem:[%s1590] sm:$0x1]
    %s1592 = scalar_lea.vmem %s9, 1
    %v1593 = vld [vmem:[%s1592] sm:$0x1]
    %v1594 = vsel %vm71, %v1588, 0.0
    %1595 = vadd.xlane.f32.xlu0 %v1594
    %v1596 = vpop.xlane.xlu0 %1595
    %v1597 = vsel %vm71, %v1589, 0.0
    %1598 = vadd.xlane.f32.xlu0 %v1597
    %v1599 = vpop.xlane.xlu0 %1598
    %v1600 = vmul.f32 %v1596, %v78
    %v1601 = vmul.f32 %v1599, %v78
    %v1602 = vsub.f32 %v1588, %v1600
    %v1603 = vsub.f32 %v1589, %v1601
    %v1604 = vmul.f32 %v1602, %v1602
    %v1605 = vmul.f32 %v1603, %v1603
    %v1606 = vsel %vm71, %v1604, 0.0
    %1607 = vadd.xlane.f32.xlu0 %v1606
    %v1608 = vpop.xlane.xlu0 %1607
    %v1609 = vsel %vm71, %v1605, 0.0
    %1610 = vadd.xlane.f32.xlu0 %v1609
    %v1611 = vpop.xlane.xlu0 %1610
    %v1612 = vmul.f32 %v1608, %v78
    %v1613 = vmul.f32 %v1611, %v78
    %v1614 = vadd.f32 %v1612, 1e-05
    %v1615 = vadd.f32 %v1613, 1e-05
    %v1616 = vrsqrt.pop %v1614
    %v1617 = vrsqrt.pop %v1615
    %v1618 = vmul.f32 %v1602, %v1616
    %v1619 = vmul.f32 %v1603, %v1617
    %v1621 = vlaneseq
    %v1622 = vshrl.u32 %v1621, 7
    %v1623 = vsub.s32 0, %v1622
    %v1624 = vrot.slane %v1591, %v1623
    %v1626 = vmul.f32 %v1618, %v1624
    %v1627 = vmul.f32 %v1619, %v1624
    %v1629 = vlaneseq
    %v1630 = vshrl.u32 %v1629, 7
    %v1631 = vsub.s32 0, %v1630
    %v1632 = vrot.slane %v1593, %v1631
    %v1634 = vadd.f32 %v1626, %v1632
    %v1635 = vadd.f32 %v1627, %v1632
    %v1636 = vpack.c.bf16 %v1635, %v1634
    %s1637 = scalar_lea.vmem %s10, 16
    %v1638 = vld [vmem:[%s1637] sm:$0xf]
    %v1639 = vld [vmem:[%s1637 + $0x4] sm:$0xf]
    %v1640 = vld [vmem:[%s1637 + $0x8] sm:$0xf]
    %v1641 = vld [vmem:[%s1637 + $0xc] sm:$0xf]
    %s1642 = scalar_lea.vmem %s11, 1
    %v1643 = vld [vmem:[%s1642] sm:$0x1]
    %v1645 = vlaneseq
    %v1646 = vshrl.u32 %v1645, 7
    %v1647 = vsub.s32 0, %v1646
    %v1648 = vrot.slane %v1643, %v1647
    %v1654 = vunpack.c.l.b16 %v1638
    %v1655 = vunpack.c.l.b16 %v1639
    %v1656 = vunpack.c.l.b16 %v1640
    %v1657 = vunpack.c.l.b16 %v1641
    %v1658 = vpack.c.b16 %v1655, %v1654
    %v1659 = vpack.c.b16 %v1657, %v1656
    %v1663 = vsel %vm71, %v1636, 0
    %1665 = vmatprep.subr.bf16.mxu0 0
    %1666 = vmatpush1.bf16.msra.mxu0 %v1658
    %1667 = vmatprep.subr.bf16.mxu0 0
    %1668 = vmatpush1.bf16.msra.mxu0 %v1659
    %1669 = vmatprep.subr.bf16.mxu0 0
    %1670 = vmatpush1.bf16.msra.mxu0 0
    %1671 = vmatprep.subr.bf16.mxu0 0
    %1672 = vmatpush1.bf16.msra.mxu0 0
    %1673 = vmatprep.subr.bf16.mxu0 0
    %1674 = vmatpush1.bf16.msra.mxu0 0
    %1675 = vmatprep.subr.bf16.mxu0 0
    %1676 = vmatpush1.bf16.msra.mxu0 0
    %1677 = vmatprep.subr.bf16.mxu0 0
    %1678 = vmatpush1.bf16.msra.mxu0 0
    %1679 = vmatprep.subr.bf16.mxu0 0
    %1680 = vmatpush1.bf16.msra.mxu0 0
    %1681 = vmatprep.subr.bf16.mxu0 0
    %1682 = vmatpush1.bf16.msra.mxu0 0
    %1683 = vmatprep.subr.bf16.mxu0 0
    %1684 = vmatpush1.bf16.msra.mxu0 0
    %1685 = vmatprep.subr.bf16.mxu0 0
    %1686 = vmatpush1.bf16.msra.mxu0 0
    %1687 = vmatprep.subr.bf16.mxu0 0
    %1688 = vmatpush1.bf16.msra.mxu0 0
    %1689 = vmatprep.subr.bf16.mxu0 0
    %1690 = vmatpush1.bf16.msra.mxu0 0
    %1691 = vmatprep.subr.bf16.mxu0 0
    %1692 = vmatpush1.bf16.msra.mxu0 0
    %1693 = vmatprep.subr.bf16.mxu0 0
    %1694 = vmatpush1.bf16.msra.mxu0 0
    %1695 = vmatprep.subr.bf16.mxu0 0
    %1696 = vmatpush1.bf16.msra.mxu0 0
    %1697 = vmatprep.mubr.bf16.mxu0 0
    %1698 = vmatmul.mubr.bf16.gmra.mrb[0].mxu0 %v1663
    %v1699 = vpop.f32.mrb[0].mxu0
    %v1700 = vadd.f32 %v1648, %v1699
    %v1701 = vpop.f32.mrb[0].mxu0
    %v1702 = vpop.f32.mrb[0].mxu0
    %v1703 = vadd.f32 %v1648, %v1702
    %v1704 = vpop.f32.mrb[0].mxu0
    %1705 = vdwg.mxu0
    %v1706 = vmul.f32 %v1700, %v1700
    %v1707 = vmul.f32 %v1703, %v1703
    %v1708 = vmul.f32 %v1700, %v1706
    %v1709 = vmul.f32 %v1703, %v1707
    %v1710 = vmul.f32 %v1708, 0.044715
    %v1711 = vmul.f32 %v1709, 0.044715
    %v1712 = vadd.f32 %v1700, %v1710
    %v1713 = vadd.f32 %v1703, %v1711
    %v1714 = vmul.f32 %v1712, 0.7978846
    %v1715 = vmul.f32 %v1713, 0.7978846
    %v1716 = vtanh.pop %v1714
    %v1717 = vtanh.pop %v1715
    %v1718 = vadd.f32 %v1716, 1.0
    %v1719 = vadd.f32 %v1717, 1.0
    %v1720 = vmul.f32 %v1718, 0.5
    %v1721 = vmul.f32 %v1719, 0.5
    %v1722 = vmul.f32 %v1700, %v1720
    %v1723 = vmul.f32 %v1703, %v1721
    %v1724 = vpack.c.bf16 %v1723, %v1722
    %s1725 = scalar_lea.vmem %s12, 32
    %v1726 = vld [vmem:[%s1725] sm:$0xf]
    %v1727 = vld [vmem:[%s1725 + $0x4] sm:$0xf]
    %v1728 = vld [vmem:[%s1725 + $0x8] sm:$0xf]
    %v1729 = vld [vmem:[%s1725 + $0xc] sm:$0xf]
    %v1730 = vld [vmem:[%s1725 + $0x10] sm:$0xf]
    %v1731 = vld [vmem:[%s1725 + $0x14] sm:$0xf]
    %v1732 = vld [vmem:[%s1725 + $0x18] sm:$0xf]
    %v1733 = vld [vmem:[%s1725 + $0x1c] sm:$0xf]
    %s1734 = scalar_lea.vmem %s13, 1
    %v1735 = vld [vmem:[%s1734] sm:$0x1]
    %v1737 = vlaneseq
    %v1738 = vshrl.u32 %v1737, 7
    %v1739 = vsub.s32 0, %v1738
    %v1740 = vrot.slane %v1735, %v1739
    %v1750 = vunpack.c.l.b16 %v1726
    %v1751 = vunpack.c.l.b16 %v1727
    %v1752 = vunpack.c.l.b16 %v1728
    %v1753 = vunpack.c.l.b16 %v1729
    %v1754 = vunpack.c.l.b16 %v1730
    %v1755 = vunpack.c.l.b16 %v1731
    %v1756 = vunpack.c.l.b16 %v1732
    %v1757 = vunpack.c.l.b16 %v1733
    %v1758 = vpack.c.b16 %v1751, %v1750
    %v1759 = vpack.c.b16 %v1753, %v1752
    %v1760 = vpack.c.b16 %v1755, %v1754
    %v1761 = vpack.c.b16 %v1757, %v1756
    %v1767 = vsel %vm899, %v1724, 0
    %1769 = vmatprep.subr.bf16.mxu0 0
    %1770 = vmatpush1.bf16.msra.mxu0 %v1758
    %1771 = vmatprep.subr.bf16.mxu0 0
    %1772 = vmatpush1.bf16.msra.mxu0 %v1759
    %1773 = vmatprep.subr.bf16.mxu0 0
    %1774 = vmatpush1.bf16.msra.mxu0 %v1760
    %1775 = vmatprep.subr.bf16.mxu0 0
    %1776 = vmatpush1.bf16.msra.mxu0 %v1761
    %1777 = vmatprep.subr.bf16.mxu0 0
    %1778 = vmatpush1.bf16.msra.mxu0 0
    %1779 = vmatprep.subr.bf16.mxu0 0
    %1780 = vmatpush1.bf16.msra.mxu0 0
    %1781 = vmatprep.subr.bf16.mxu0 0
    %1782 = vmatpush1.bf16.msra.mxu0 0
    %1783 = vmatprep.subr.bf16.mxu0 0
    %1784 = vmatpush1.bf16.msra.mxu0 0
    %1785 = vmatprep.subr.bf16.mxu0 0
    %1786 = vmatpush1.bf16.msra.mxu0 0
    %1787 = vmatprep.subr.bf16.mxu0 0
    %1788 = vmatpush1.bf16.msra.mxu0 0
    %1789 = vmatprep.subr.bf16.mxu0 0
    %1790 = vmatpush1.bf16.msra.mxu0 0
    %1791 = vmatprep.subr.bf16.mxu0 0
    %1792 = vmatpush1.bf16.msra.mxu0 0
    %1793 = vmatprep.subr.bf16.mxu0 0
    %1794 = vmatpush1.bf16.msra.mxu0 0
    %1795 = vmatprep.subr.bf16.mxu0 0
    %1796 = vmatpush1.bf16.msra.mxu0 0
    %1797 = vmatprep.subr.bf16.mxu0 0
    %1798 = vmatpush1.bf16.msra.mxu0 0
    %1799 = vmatprep.subr.bf16.mxu0 0
    %1800 = vmatpush1.bf16.msra.mxu0 0
    %1801 = vmatprep.mubr.bf16.mxu0 0
    %1802 = vmatmul.mubr.bf16.gmra.mrb[0].mxu0 %v1767
    %v1803 = vpop.f32.mrb[0].mxu0
    %v1804 = vadd.f32 %v1740, %v1803
    %v1805 = vpop.f32.mrb[0].mxu0
    %v1806 = vpop.f32.mrb[0].mxu0
    %v1807 = vadd.f32 %v1740, %v1806
    %v1808 = vpop.f32.mrb[0].mxu0
    %1809 = vdwg.mxu0
    %v1810 = vadd.f32 %v1804, %v1634
    %v1811 = vadd.f32 %v1807, %v1635
    %s1812 = scalar_lea.vmem %s14, 1
    %v1813 = vld [vmem:[%s1812] sm:$0x1]
    %s1814 = scalar_lea.vmem %s15, 1
    %v1815 = vld [vmem:[%s1814] sm:$0x1]
    %v1816 = vsel %vm71, %v1810, 0.0
    %1817 = vadd.xlane.f32.xlu0 %v1816
    %v1818 = vpop.xlane.xlu0 %1817
    %v1819 = vsel %vm71, %v1811, 0.0
    %1820 = vadd.xlane.f32.xlu0 %v1819
    %v1821 = vpop.xlane.xlu0 %1820
    %v1822 = vmul.f32 %v1818, %v78
    %v1823 = vmul.f32 %v1821, %v78
    %v1824 = vsub.f32 %v1810, %v1822
    %v1825 = vsub.f32 %v1811, %v1823
    %v1826 = vmul.f32 %v1824, %v1824
    %v1827 = vmul.f32 %v1825, %v1825
    %v1828 = vsel %vm71, %v1826, 0.0
    %1829 = vadd.xlane.f32.xlu0 %v1828
    %v1830 = vpop.xlane.xlu0 %1829
    %v1831 = vsel %vm71, %v1827, 0.0
    %1832 = vadd.xlane.f32.xlu0 %v1831
    %v1833 = vpop.xlane.xlu0 %1832
    %v1834 = vmul.f32 %v1830, %v78
    %v1835 = vmul.f32 %v1833, %v78
    %v1836 = vadd.f32 %v1834, 1e-05
    %v1837 = vadd.f32 %v1835, 1e-05
    %v1838 = vrsqrt.pop %v1836
    %v1839 = vrsqrt.pop %v1837
    %v1840 = vmul.f32 %v1824, %v1838
    %v1841 = vmul.f32 %v1825, %v1839
    %v1843 = vlaneseq
    %v1844 = vshrl.u32 %v1843, 7
    %v1845 = vsub.s32 0, %v1844
    %v1846 = vrot.slane %v1813, %v1845
    %v1848 = vmul.f32 %v1840, %v1846
    %v1849 = vmul.f32 %v1841, %v1846
    %v1851 = vlaneseq
    %v1852 = vshrl.u32 %v1851, 7
    %v1853 = vsub.s32 0, %v1852
    %v1854 = vrot.slane %v1815, %v1853
    %v1856 = vadd.f32 %v1848, %v1854
    %v1857 = vadd.f32 %v1849, %v1854
    %v1859 = vrot.slane %v1857, 7
    %vm1861 = vcmask 1040384
    %v1862 = vsel %vm1861, %v1856, %v1859
    %v1863 = vpack.c.bf16 %v1862, %v1862
    %v1864 = vld [vmem:[%s16] sm:$0xf]
    %v1865 = vld [vmem:[%s16 + $0x4] sm:$0xf]
    %v1866 = vld [vmem:[%s16 + $0x8] sm:$0xf]
    %v1867 = vld [vmem:[%s16 + $0xc] sm:$0xf]
    %v1868 = vld [vmem:[%s17] sm:$0x1]
    %v1870 = vlaneseq
    %v1871 = vshrl.u32 %v1870, 7
    %v1872 = vsub.s32 0, %v1871
    %v1873 = vrot.slane %v1868, %v1872
    %v1879 = vunpack.c.l.b16 %v1864
    %v1880 = vunpack.c.l.b16 %v1865
    %v1881 = vunpack.c.l.b16 %v1866
    %v1882 = vunpack.c.l.b16 %v1867
    %v1883 = vpack.c.b16 %v1880, %v1879
    %v1884 = vpack.c.b16 %v1882, %v1881
    %v1888 = vsel %vm71, %v1863, 0
    %1890 = vmatprep.subr.bf16.mxu0 0
    %1891 = vmatpush1.bf16.msra.mxu0 %v1883
    %1892 = vmatprep.subr.bf16.mxu0 0
    %1893 = vmatpush1.bf16.msra.mxu0 %v1884
    %1894 = vmatprep.subr.bf16.mxu0 0
    %1895 = vmatpush1.bf16.msra.mxu0 0
    %1896 = vmatprep.subr.bf16.mxu0 0
    %1897 = vmatpush1.bf16.msra.mxu0 0
    %1898 = vmatprep.subr.bf16.mxu0 0
    %1899 = vmatpush1.bf16.msra.mxu0 0
    %1900 = vmatprep.subr.bf16.mxu0 0
    %1901 = vmatpush1.bf16.msra.mxu0 0
    %1902 = vmatprep.subr.bf16.mxu0 0
    %1903 = vmatpush1.bf16.msra.mxu0 0
    %1904 = vmatprep.subr.bf16.mxu0 0
    %1905 = vmatpush1.bf16.msra.mxu0 0
    %1906 = vmatprep.subr.bf16.mxu0 0
    %1907 = vmatpush1.bf16.msra.mxu0 0
    %1908 = vmatprep.subr.bf16.mxu0 0
    %1909 = vmatpush1.bf16.msra.mxu0 0
    %1910 = vmatprep.subr.bf16.mxu0 0
    %1911 = vmatpush1.bf16.msra.mxu0 0
    %1912 = vmatprep.subr.bf16.mxu0 0
    %1913 = vmatpush1.bf16.msra.mxu0 0
    %1914 = vmatprep.subr.bf16.mxu0 0
    %1915 = vmatpush1.bf16.msra.mxu0 0
    %1916 = vmatprep.subr.bf16.mxu0 0
    %1917 = vmatpush1.bf16.msra.mxu0 0
    %1918 = vmatprep.subr.bf16.mxu0 0
    %1919 = vmatpush1.bf16.msra.mxu0 0
    %1920 = vmatprep.subr.bf16.mxu0 0
    %1921 = vmatpush1.bf16.msra.mxu0 0
    %1922 = vmatprep.mubr.bf16.mxu0 0
    %1923 = vmatmul.mubr.bf16.gmra.mrb[0].mxu0 %v1888
    %v1924 = vpop.f32.mrb[0].mxu0
    %v1925 = vadd.f32 %v1873, %v1924
    %v1926 = vpop.f32.mrb[0].mxu0
    %v1927 = vpop.f32.mrb[0].mxu0
    %v1928 = vpop.f32.mrb[0].mxu0
    %1929 = vdwg.mxu0
    %v1930 = vtanh.pop %v1925
    %v1931 = vpack.c.bf16 %v1930, %v1930
    %v1932 = vld [vmem:[%s18] sm:$0xf]
    %v1933 = vld [vmem:[%s18 + $0x4] sm:$0xf]
    %v1934 = vld [vmem:[%s18 + $0x8] sm:$0xf]
    %v1935 = vld [vmem:[%s18 + $0xc] sm:$0xf]
    %v1936 = vld [vmem:[%s19] sm:$0x1]
    %v1938 = vlaneseq
    %v1939 = vshrl.u32 %v1938, 7
    %v1940 = vsub.s32 0, %v1939
    %v1941 = vrot.slane %v1936, %v1940
    %v1947 = vunpack.c.l.b16 %v1932
    %v1948 = vunpack.c.l.b16 %v1933
    %v1949 = vunpack.c.l.b16 %v1934
    %v1950 = vunpack.c.l.b16 %v1935
    %v1951 = vpack.c.b16 %v1948, %v1947
    %v1952 = vpack.c.b16 %v1950, %v1949
    %v1956 = vsel %vm71, %v1931, 0
    %1958 = vmatprep.subr.bf16.mxu0 0
    %1959 = vmatpush1.bf16.msra.mxu0 %v1951
    %1960 = vmatprep.subr.bf16.mxu0 0
    %1961 = vmatpush1.bf16.msra.mxu0 %v1952
    %1962 = vmatprep.subr.bf16.mxu0 0
    %1963 = vmatpush1.bf16.msra.mxu0 0
    %1964 = vmatprep.subr.bf16.mxu0 0
    %1965 = vmatpush1.bf16.msra.mxu0 0
    %1966 = vmatprep.subr.bf16.mxu0 0
    %1967 = vmatpush1.bf16.msra.mxu0 0
    %1968 = vmatprep.subr.bf16.mxu0 0
    %1969 = vmatpush1.bf16.msra.mxu0 0
    %1970 = vmatprep.subr.bf16.mxu0 0
    %1971 = vmatpush1.bf16.msra.mxu0 0
    %1972 = vmatprep.subr.bf16.mxu0 0
    %1973 = vmatpush1.bf16.msra.mxu0 0
    %1974 = vmatprep.subr.bf16.mxu0 0
    %1975 = vmatpush1.bf16.msra.mxu0 0
    %1976 = vmatprep.subr.bf16.mxu0 0
    %1977 = vmatpush1.bf16.msra.mxu0 0
    %1978 = vmatprep.subr.bf16.mxu0 0
    %1979 = vmatpush1.bf16.msra.mxu0 0
    %1980 = vmatprep.subr.bf16.mxu0 0
    %1981 = vmatpush1.bf16.msra.mxu0 0
    %1982 = vmatprep.subr.bf16.mxu0 0
    %1983 = vmatpush1.bf16.msra.mxu0 0
    %1984 = vmatprep.subr.bf16.mxu0 0
    %1985 = vmatpush1.bf16.msra.mxu0 0
    %1986 = vmatprep.subr.bf16.mxu0 0
    %1987 = vmatpush1.bf16.msra.mxu0 0
    %1988 = vmatprep.subr.bf16.mxu0 0
    %1989 = vmatpush1.bf16.msra.mxu0 0
    %1990 = vmatprep.mubr.bf16.mxu0 0
    %1991 = vmatmul.mubr.bf16.gmra.mrb[0].mxu0 %v1956
    %v1992 = vpop.f32.mrb[0].mxu0
    %v1993 = vadd.f32 %v1941, %v1992
    %v1994 = vpop.f32.mrb[0].mxu0
    %v1995 = vpop.f32.mrb[0].mxu0
    %v1996 = vpop.f32.mrb[0].mxu0
    %1997 = vdwg.mxu0
    %1998 = vst [vmem:[#allocation2] sm:$0x3] %v1993
    // Predicated region
    $region82: #{phobert_classifier_forward.1} parent=1 // pred_check
      _
    $region83: #{phobert_classifier_forward.1} parent=1 // pred_check_branch
      %2000 = sbr.rel (0) target = $region85
    $region84: #{phobert_classifier_forward.1} parent=1 // pred_region
      %s2002 = ssub.s32 32, 32
      %2003 = vsyncadd [#allocation3], %s2002
      %s2005 = sshll.u32 [#allocation2], 4
      %s2006 = int_to_ptr.vmem [resolvable:$true] %s2005
      %2008 = dma.vmem_to_hbm [thread:$0]  %s2006, 32, %s20, [#allocation3]
    $region85: #{phobert_classifier_forward.1} parent=1 // pred_fallthru
      _
    // Predicated region
    $region86: #{phobert_classifier_forward.1} parent=1 // pred_check
      _
    $region87: #{phobert_classifier_forward.1} parent=1 // pred_check_branch
      %2010 = sbr.rel (0) target = $region89
    $region88: #{phobert_classifier_forward.1} parent=1 // pred_region
      %2011 = dma.done [#allocation3], 32
    $region89: #{phobert_classifier_forward.1} parent=1 // pred_fallthru
      _
    %2012 = vsyncpa [#allocation3], 1

</llo_original>
